<compile_context>
chip_gen: v7x
topology: tpu7x:2x2x1
jax: 0.10.0
libtpu: 0.0.40
codegen_flags: <defaults>
</compile_context>

<pallas_src>
import functools
import math

import jax
import jax.numpy as jnp
from jax.experimental import pallas as pl
from jax.experimental.pallas import tpu as pltpu

# ----------------------------- small synthetic XLNet config ------------------
VOCAB = 100
D_MODEL = 32
N_HEAD = 2
D_HEAD = 16
D_INNER = 64
N_LAYER = 2
LN_EPS = 1e-12
NH = N_HEAD * D_HEAD

# MXU operands are cast to bf16 (single-pass MXU on all generations); set to
# jnp.float32 to recover full-precision matmuls.  All elementwise / reduction
# math (LN, softmax, residuals) stays f32 (v5e has no bf16 VPU).
MXU_DTYPE = jnp.bfloat16


def _mxu(x):
    return x.astype(MXU_DTYPE)


def _erf_approx(x):
    # Abramowitz & Stegun 7.1.26 (|err| < 1.5e-7); only uses exp (EUP slot).
    p = 0.3275911
    a1, a2, a3, a4, a5 = (0.254829592, -0.284496736, 1.421413741,
                          -1.453152027, 1.061405429)
    ax = jnp.abs(x)
    t = 1.0 / (1.0 + p * ax)
    poly = ((((a5 * t + a4) * t + a3) * t + a2) * t + a1) * t
    y = 1.0 - poly * jnp.exp(-ax * ax)
    return jnp.where(x >= 0.0, y, -y)


def _gelu(x):
    # TODO(synk): HF XLNet "gelu" is the exact erf GELU; lax.erf has no Mosaic
    # lowering, so a high-accuracy rational erf approximation is used instead.
    return 0.5 * x * (1.0 + _erf_approx(x * 0.7071067811865476))


def _layer_norm(x, g, b, eps):
    mu = jnp.mean(x, axis=-1, keepdims=True)
    var = jnp.mean((x - mu) ** 2, axis=-1, keepdims=True)
    return (x - mu) * jax.lax.rsqrt(var + eps) * g + b


# ----------------------------- fused per-layer kernel ------------------------
def _xlnet_layer_kernel(h_ref, pos_ref, wqkv_ref, wr_ref, rwb_ref, rrb_ref,
                        wo_ref, ln1g_ref, ln1b_ref, w1_ref, b1_ref, w2_ref,
                        b2_ref, ln2g_ref, ln2b_ref, o_ref, *,
                        n_head, d_head, scale, eps):
    """One full XLNet layer for one batch element (grid axis = batch)."""
    h = h_ref[...]                                   # (S, D) f32
    S = h.shape[0]
    nh = n_head * d_head

    # Fused Q/K/V projection (one MXU pass) + relative-position projection.
    qkv = jnp.dot(_mxu(h), _mxu(wqkv_ref[...]),
                  preferred_element_type=jnp.float32)            # (S, 3*nh)
    kr = jnp.dot(_mxu(pos_ref[...]), _mxu(wr_ref[...]),
                 preferred_element_type=jnp.float32)             # (2S, nh)
    q = qkv[:, :nh]
    k = qkv[:, nh:2 * nh]
    v = qkv[:, 2 * nh:3 * nh]
    qw = q + rwb_ref[...]                            # content-bias query
    qr = q + rrb_ref[...]                            # position-bias query

    wo = wo_ref[...]                                 # (nh, D)
    row_ids = jax.lax.broadcasted_iota(jnp.int32, (S, S), 0)     # hoisted
    dn = (((1,), (1,)), ((), ()))                    # contract last dims (A @ B.T)

    attn_out = jnp.zeros(h.shape, jnp.float32)
    for n in range(n_head):                          # static, unrolled (N_HEAD=2)
        lo, hi = n * d_head, (n + 1) * d_head
        qw_n, qr_n = qw[:, lo:hi], qr[:, lo:hi]
        k_n, v_n, kr_n = k[:, lo:hi], v[:, lo:hi], kr[:, lo:hi]

        ac = jax.lax.dot_general(_mxu(qw_n), _mxu(k_n), dn,
                                 preferred_element_type=jnp.float32)      # (S, S)
        bd_full = jax.lax.dot_general(_mxu(qr_n), _mxu(kr_n), dn,
                                      preferred_element_type=jnp.float32)  # (S, 2S)

        # XLNet rel_shift_bnij: bd[i, j] = bd_full[i, j + S - i]  (klen == qlen).
        # Static shifted lane-slices + row select; no O(S^3) masked reduce.
        bd = jnp.zeros((S, S), jnp.float32)
        for i in range(S):
            bd = bd + jnp.where(row_ids == i, bd_full[:, S - i:2 * S - i], 0.0)

        score = (ac + bd) * scale
        score = score - jnp.max(score, axis=-1, keepdims=True)
        p = jnp.exp(score)
        p = p * pl.reciprocal(jnp.sum(p, axis=-1, keepdims=True), approx=True)

        o_n = jnp.dot(_mxu(p), _mxu(v_n), preferred_element_type=jnp.float32)
        # Per-head slice of the output projection (avoids a head concat).
        attn_out = attn_out + jnp.dot(_mxu(o_n), _mxu(wo[lo:hi, :]),
                                      preferred_element_type=jnp.float32)

    # Post-attention residual + LayerNorm.
    h1 = _layer_norm(attn_out + h, ln1g_ref[...], ln1b_ref[...], eps)

    # Feed-forward: linear -> GELU -> linear -> residual -> LayerNorm.
    ff = jnp.dot(_mxu(h1), _mxu(w1_ref[...]),
                 preferred_element_type=jnp.float32) + b1_ref[...]
    ff = _gelu(ff)
    ff = jnp.dot(_mxu(ff), _mxu(w2_ref[...]),
                 preferred_element_type=jnp.float32) + b2_ref[...]
    o_ref[...] = _layer_norm(ff + h1, ln2g_ref[...], ln2b_ref[...], eps)


def xlnet_layer(h, pos_emb, lp):
    """h: (B, S, D) -> (B, S, D); one pallas_call per layer, grid over batch."""
    B, S, D = h.shape
    kernel = functools.partial(_xlnet_layer_kernel, n_head=N_HEAD,
                               d_head=D_HEAD, scale=1.0 / math.sqrt(D_HEAD),
                               eps=LN_EPS)

    def resident(arr):
        # Whole array, same block on every grid step -> stays VMEM-resident
        # (Pallas skips the re-copy when the block index is unchanged).
        nd = arr.ndim
        return pl.BlockSpec(arr.shape, lambda b, _nd=nd: (0,) * _nd)

    batched = pl.BlockSpec((None, S, D), lambda b: (b, 0, 0))
    weights = (pos_emb, lp["wqkv"], lp["wr"], lp["r_w_bias"], lp["r_r_bias"],
               lp["wo"], lp["ln1_g"], lp["ln1_b"], lp["w1"], lp["b1"],
               lp["w2"], lp["b2"], lp["ln2_g"], lp["ln2_b"])
    return pl.pallas_call(
        kernel,
        out_shape=jax.ShapeDtypeStruct((B, S, D), jnp.float32),
        grid=(B,),
        in_specs=[batched] + [resident(w) for w in weights],
        out_specs=batched,
        compiler_params=pltpu.CompilerParams(dimension_semantics=("parallel",)),
    )(h, *weights)


# ----------------------------- parameters (deterministic) --------------------
def init_params(key):
    def nrm(k, shape):
        return 0.02 * jax.random.normal(k, shape, jnp.float32)

    keys = jax.random.split(key, 1 + N_LAYER)
    params = {"word_emb": nrm(keys[0], (VOCAB, D_MODEL))}
    layers = []
    for i in range(N_LAYER):
        ks = jax.random.split(keys[1 + i], 9)
        wq, wk, wv = (nrm(ks[0], (D_MODEL, NH)), nrm(ks[1], (D_MODEL, NH)),
                      nrm(ks[2], (D_MODEL, NH)))
        layers.append(dict(
            wqkv=jnp.concatenate([wq, wk, wv], axis=1),        # fused QKV weight
            wr=nrm(ks[3], (D_MODEL, NH)),
            wo=nrm(ks[4], (NH, D_MODEL)),
            r_w_bias=nrm(ks[5], (N_HEAD, D_HEAD)).reshape(1, NH),
            r_r_bias=nrm(ks[6], (N_HEAD, D_HEAD)).reshape(1, NH),
            ln1_g=jnp.ones((1, D_MODEL), jnp.float32),
            ln1_b=jnp.zeros((1, D_MODEL), jnp.float32),
            w1=nrm(ks[7], (D_MODEL, D_INNER)),
            b1=jnp.zeros((1, D_INNER), jnp.float32),
            w2=nrm(ks[8], (D_INNER, D_MODEL)),
            b2=jnp.zeros((1, D_MODEL), jnp.float32),
            ln2_g=jnp.ones((1, D_MODEL), jnp.float32),
            ln2_b=jnp.zeros((1, D_MODEL), jnp.float32),
        ))
    params["layers"] = layers
    return params


# ----------------------------- WrapXLNet.forward ------------------------------
def wrap_xlnet_forward(params, input_ids):
    B, S = input_ids.shape
    D = D_MODEL
    klen = S                                  # no mems

    # Relative positional encoding (glue): pos_seq = [klen, ..., -qlen+1].
    freq = jnp.arange(0, D, 2, dtype=jnp.float32)
    inv_freq = 1.0 / (10000.0 ** (freq / D))
    pos_seq = jnp.arange(klen, -S, -1, dtype=jnp.float32)
    sinusoid = pos_seq[:, None] * inv_freq[None, :]
    pos_emb = jnp.concatenate([jnp.sin(sinusoid), jnp.cos(sinusoid)], axis=-1)  # (2S, D)

    # Embedding lookup (glue); hidden state kept (batch, seq, d_model).
    h = jnp.take(params["word_emb"], input_ids, axis=0)          # (B, S, D)

    mems = []
    for lp in params["layers"]:
        mems.append(h)                        # XLNetModel caches the layer *input*
        h = xlnet_layer(h, pos_emb, lp)

    last_hidden = h                                               # (batch, seq, d_model)
    mems = jnp.transpose(jnp.stack(mems, axis=0), (0, 2, 1, 3))   # (n_layer, seq, batch, d_model)
    # WrapXLNet.forward returns (results[0], results[0], results[1])
    return last_hidden, last_hidden, mems


# ----------------------------- demo -------------------------------------------
if __name__ == "__main__":
    key = jax.random.PRNGKey(0)
    pkey, ikey = jax.random.split(key)
    params = init_params(pkey)

    batch, seq = 2, 8
    input_ids = jax.random.randint(ikey, (batch, seq), 0, VOCAB, dtype=jnp.int32)

    fwd = jax.jit(wrap_xlnet_forward)
    out0, out1, mems = fwd(params, input_ids)
    jax.block_until_ready((out0, out1, mems))

    assert out0.shape == (batch, seq, D_MODEL)
    assert out1.shape == (batch, seq, D_MODEL)
    assert mems.shape == (N_LAYER, seq, batch, D_MODEL)
    assert bool(jnp.all(jnp.isfinite(out0)))
    print("KERNEL_OK")
</pallas_src>

<mosaic_0001>
module attributes {stable_mosaic.version = 11 : i64} {
  func.func @_xlnet_layer_kernel(%arg0: i32, %arg1: memref<1x8x32xf32, #tpu.memory_space<vmem>>, %arg2: memref<16x32xf32, #tpu.memory_space<vmem>>, %arg3: memref<32x96xf32, #tpu.memory_space<vmem>>, %arg4: memref<32x32xf32, #tpu.memory_space<vmem>>, %arg5: memref<1x32xf32, #tpu.memory_space<vmem>>, %arg6: memref<1x32xf32, #tpu.memory_space<vmem>>, %arg7: memref<32x32xf32, #tpu.memory_space<vmem>>, %arg8: memref<1x32xf32, #tpu.memory_space<vmem>>, %arg9: memref<1x32xf32, #tpu.memory_space<vmem>>, %arg10: memref<32x64xf32, #tpu.memory_space<vmem>>, %arg11: memref<1x64xf32, #tpu.memory_space<vmem>>, %arg12: memref<64x32xf32, #tpu.memory_space<vmem>>, %arg13: memref<1x32xf32, #tpu.memory_space<vmem>>, %arg14: memref<1x32xf32, #tpu.memory_space<vmem>>, %arg15: memref<1x32xf32, #tpu.memory_space<vmem>>, %arg16: memref<1x8x32xf32, #tpu.memory_space<vmem>>) attributes {dimension_semantics = [#tpu.dimension_semantics<parallel>], iteration_bounds = array<i64: 2>, scalar_prefetch = 0 : i64, scratch_operands = 0 : i64, tpu.core_type = #tpu.core_type<tc>, window_params = [{transform_indices = @transform_0, window_bounds = array<i64: 1, 8, 32>}, {pipeline_mode = #tpu.pipeline_mode<synchronous>, transform_indices = @transform_1, window_bounds = array<i64: 16, 32>}, {pipeline_mode = #tpu.pipeline_mode<synchronous>, transform_indices = @transform_2, window_bounds = array<i64: 32, 96>}, {pipeline_mode = #tpu.pipeline_mode<synchronous>, transform_indices = @transform_3, window_bounds = array<i64: 32, 32>}, {pipeline_mode = #tpu.pipeline_mode<synchronous>, transform_indices = @transform_4, window_bounds = array<i64: 1, 32>}, {pipeline_mode = #tpu.pipeline_mode<synchronous>, transform_indices = @transform_5, window_bounds = array<i64: 1, 32>}, {pipeline_mode = #tpu.pipeline_mode<synchronous>, transform_indices = @transform_6, window_bounds = array<i64: 32, 32>}, {pipeline_mode = #tpu.pipeline_mode<synchronous>, transform_indices = @transform_7, window_bounds = array<i64: 1, 32>}, {pipeline_mode = #tpu.pipeline_mode<synchronous>, transform_indices = @transform_8, window_bounds = array<i64: 1, 32>}, {pipeline_mode = #tpu.pipeline_mode<synchronous>, transform_indices = @transform_9, window_bounds = array<i64: 32, 64>}, {pipeline_mode = #tpu.pipeline_mode<synchronous>, transform_indices = @transform_10, window_bounds = array<i64: 1, 64>}, {pipeline_mode = #tpu.pipeline_mode<synchronous>, transform_indices = @transform_11, window_bounds = array<i64: 64, 32>}, {pipeline_mode = #tpu.pipeline_mode<synchronous>, transform_indices = @transform_12, window_bounds = array<i64: 1, 32>}, {pipeline_mode = #tpu.pipeline_mode<synchronous>, transform_indices = @transform_13, window_bounds = array<i64: 1, 32>}, {pipeline_mode = #tpu.pipeline_mode<synchronous>, transform_indices = @transform_14, window_bounds = array<i64: 1, 32>}, {transform_indices = @transform_15, window_bounds = array<i64: 1, 8, 32>}]} {
    %c0 = arith.constant 0 : index
    %c0_0 = arith.constant 0 : index
    %c0_1 = arith.constant 0 : index
    %0 = vector.load %arg1[%c0, %c0_0, %c0_1] : memref<1x8x32xf32, #tpu.memory_space<vmem>>, vector<1x8x32xf32>
    %1 = vector.shape_cast %0 : vector<1x8x32xf32> to vector<8x32xf32>
    %2 = arith.truncf %1 : vector<8x32xf32> to vector<8x32xbf16>
    %c0_2 = arith.constant 0 : index
    %c0_3 = arith.constant 0 : index
    %3 = vector.load %arg3[%c0_2, %c0_3] : memref<32x96xf32, #tpu.memory_space<vmem>>, vector<32x96xf32>
    %4 = arith.truncf %3 : vector<32x96xf32> to vector<32x96xbf16>
    %cst = arith.constant dense<0.000000e+00> : vector<8x96xf32>
    %5 = tpu.matmul %2, %4, %cst {dimension_numbers = #tpu.dot_dimension_numbers<[1], [0], [0], [1], [0, 0, 1, 1], [], []>} : vector<8x32xbf16>, vector<32x96xbf16>, vector<8x96xf32> -> vector<8x96xf32>
    %c0_4 = arith.constant 0 : index
    %c0_5 = arith.constant 0 : index
    %6 = vector.load %arg2[%c0_4, %c0_5] : memref<16x32xf32, #tpu.memory_space<vmem>>, vector<16x32xf32>
    %7 = arith.truncf %6 : vector<16x32xf32> to vector<16x32xbf16>
    %c0_6 = arith.constant 0 : index
    %c0_7 = arith.constant 0 : index
    %8 = vector.load %arg4[%c0_6, %c0_7] : memref<32x32xf32, #tpu.memory_space<vmem>>, vector<32x32xf32>
    %9 = arith.truncf %8 : vector<32x32xf32> to vector<32x32xbf16>
    %cst_8 = arith.constant dense<0.000000e+00> : vector<16x32xf32>
    %10 = tpu.matmul %7, %9, %cst_8 {dimension_numbers = #tpu.dot_dimension_numbers<[1], [0], [0], [1], [0, 0, 1, 1], [], []>} : vector<16x32xbf16>, vector<32x32xbf16>, vector<16x32xf32> -> vector<16x32xf32>
    %11 = vector.extract_strided_slice %5 {offsets = [0, 0], sizes = [8, 32], strides = [1, 1]} : vector<8x96xf32> to vector<8x32xf32>
    %12 = vector.extract_strided_slice %5 {offsets = [0, 32], sizes = [8, 32], strides = [1, 1]} : vector<8x96xf32> to vector<8x32xf32>
    %13 = vector.extract_strided_slice %5 {offsets = [0, 64], sizes = [8, 32], strides = [1, 1]} : vector<8x96xf32> to vector<8x32xf32>
    %c0_9 = arith.constant 0 : index
    %c0_10 = arith.constant 0 : index
    %14 = vector.load %arg5[%c0_9, %c0_10] : memref<1x32xf32, #tpu.memory_space<vmem>>, vector<1x32xf32>
    %15 = vector.broadcast %14 : vector<1x32xf32> to vector<8x32xf32>
    %16 = arith.addf %11, %15 : vector<8x32xf32>
    %c0_11 = arith.constant 0 : index
    %c0_12 = arith.constant 0 : index
    %17 = vector.load %arg6[%c0_11, %c0_12] : memref<1x32xf32, #tpu.memory_space<vmem>>, vector<1x32xf32>
    %18 = vector.broadcast %17 : vector<1x32xf32> to vector<8x32xf32>
    %19 = arith.addf %11, %18 : vector<8x32xf32>
    %c0_13 = arith.constant 0 : index
    %c0_14 = arith.constant 0 : index
    %20 = vector.load %arg7[%c0_13, %c0_14] : memref<32x32xf32, #tpu.memory_space<vmem>>, vector<32x32xf32>
    %21 = tpu.iota {dimensions = array<i32: 0>} : vector<8x8xi32>
    %cst_15 = arith.constant 0.000000e+00 : f32
    %22 = vector.broadcast %cst_15 : f32 to vector<8x32xf32>
    %23 = vector.extract_strided_slice %16 {offsets = [0, 0], sizes = [8, 16], strides = [1, 1]} : vector<8x32xf32> to vector<8x16xf32>
    %24 = vector.extract_strided_slice %19 {offsets = [0, 0], sizes = [8, 16], strides = [1, 1]} : vector<8x32xf32> to vector<8x16xf32>
    %25 = vector.extract_strided_slice %12 {offsets = [0, 0], sizes = [8, 16], strides = [1, 1]} : vector<8x32xf32> to vector<8x16xf32>
    %26 = vector.extract_strided_slice %13 {offsets = [0, 0], sizes = [8, 16], strides = [1, 1]} : vector<8x32xf32> to vector<8x16xf32>
    %27 = vector.extract_strided_slice %10 {offsets = [0, 0], sizes = [16, 16], strides = [1, 1]} : vector<16x32xf32> to vector<16x16xf32>
    %28 = arith.truncf %23 : vector<8x16xf32> to vector<8x16xbf16>
    %29 = arith.truncf %25 : vector<8x16xf32> to vector<8x16xbf16>
    %cst_16 = arith.constant dense<0.000000e+00> : vector<8x8xf32>
    %30 = tpu.matmul %28, %29, %cst_16 {dimension_numbers = #tpu.dot_dimension_numbers<[1], [1], [0], [0], [0, 0, 1, 0], [], []>} : vector<8x16xbf16>, vector<8x16xbf16>, vector<8x8xf32> -> vector<8x8xf32>
    %31 = arith.truncf %24 : vector<8x16xf32> to vector<8x16xbf16>
    %32 = arith.truncf %27 : vector<16x16xf32> to vector<16x16xbf16>
    %cst_17 = arith.constant dense<0.000000e+00> : vector<8x16xf32>
    %33 = tpu.matmul %31, %32, %cst_17 {dimension_numbers = #tpu.dot_dimension_numbers<[1], [1], [0], [0], [0, 0, 1, 0], [], []>} : vector<8x16xbf16>, vector<16x16xbf16>, vector<8x16xf32> -> vector<8x16xf32>
    %cst_18 = arith.constant 0.000000e+00 : f32
    %34 = vector.broadcast %cst_18 : f32 to vector<8x8xf32>
    %c0_i32 = arith.constant 0 : i32
    %35 = vector.broadcast %c0_i32 : i32 to vector<8x8xi32>
    %36 = arith.cmpi eq, %21, %35 : vector<8x8xi32>
    %37 = vector.extract_strided_slice %33 {offsets = [0, 8], sizes = [8, 8], strides = [1, 1]} : vector<8x16xf32> to vector<8x8xf32>
    %cst_19 = arith.constant 0.000000e+00 : f32
    %38 = vector.broadcast %cst_19 : f32 to vector<8x8xf32>
    %39 = arith.select %36, %37, %38 : vector<8x8xi1>, vector<8x8xf32>
    %40 = arith.addf %34, %39 : vector<8x8xf32>
    %c1_i32 = arith.constant 1 : i32
    %41 = vector.broadcast %c1_i32 : i32 to vector<8x8xi32>
    %42 = arith.cmpi eq, %21, %41 : vector<8x8xi32>
    %43 = vector.extract_strided_slice %33 {offsets = [0, 7], sizes = [8, 8], strides = [1, 1]} : vector<8x16xf32> to vector<8x8xf32>
    %cst_20 = arith.constant 0.000000e+00 : f32
    %44 = vector.broadcast %cst_20 : f32 to vector<8x8xf32>
    %45 = arith.select %42, %43, %44 : vector<8x8xi1>, vector<8x8xf32>
    %46 = arith.addf %40, %45 : vector<8x8xf32>
    %c2_i32 = arith.constant 2 : i32
    %47 = vector.broadcast %c2_i32 : i32 to vector<8x8xi32>
    %48 = arith.cmpi eq, %21, %47 : vector<8x8xi32>
    %49 = vector.extract_strided_slice %33 {offsets = [0, 6], sizes = [8, 8], strides = [1, 1]} : vector<8x16xf32> to vector<8x8xf32>
    %cst_21 = arith.constant 0.000000e+00 : f32
    %50 = vector.broadcast %cst_21 : f32 to vector<8x8xf32>
    %51 = arith.select %48, %49, %50 : vector<8x8xi1>, vector<8x8xf32>
    %52 = arith.addf %46, %51 : vector<8x8xf32>
    %c3_i32 = arith.constant 3 : i32
    %53 = vector.broadcast %c3_i32 : i32 to vector<8x8xi32>
    %54 = arith.cmpi eq, %21, %53 : vector<8x8xi32>
    %55 = vector.extract_strided_slice %33 {offsets = [0, 5], sizes = [8, 8], strides = [1, 1]} : vector<8x16xf32> to vector<8x8xf32>
    %cst_22 = arith.constant 0.000000e+00 : f32
    %56 = vector.broadcast %cst_22 : f32 to vector<8x8xf32>
    %57 = arith.select %54, %55, %56 : vector<8x8xi1>, vector<8x8xf32>
    %58 = arith.addf %52, %57 : vector<8x8xf32>
    %c4_i32 = arith.constant 4 : i32
    %59 = vector.broadcast %c4_i32 : i32 to vector<8x8xi32>
    %60 = arith.cmpi eq, %21, %59 : vector<8x8xi32>
    %61 = vector.extract_strided_slice %33 {offsets = [0, 4], sizes = [8, 8], strides = [1, 1]} : vector<8x16xf32> to vector<8x8xf32>
    %cst_23 = arith.constant 0.000000e+00 : f32
    %62 = vector.broadcast %cst_23 : f32 to vector<8x8xf32>
    %63 = arith.select %60, %61, %62 : vector<8x8xi1>, vector<8x8xf32>
    %64 = arith.addf %58, %63 : vector<8x8xf32>
    %c5_i32 = arith.constant 5 : i32
    %65 = vector.broadcast %c5_i32 : i32 to vector<8x8xi32>
    %66 = arith.cmpi eq, %21, %65 : vector<8x8xi32>
    %67 = vector.extract_strided_slice %33 {offsets = [0, 3], sizes = [8, 8], strides = [1, 1]} : vector<8x16xf32> to vector<8x8xf32>
    %cst_24 = arith.constant 0.000000e+00 : f32
    %68 = vector.broadcast %cst_24 : f32 to vector<8x8xf32>
    %69 = arith.select %66, %67, %68 : vector<8x8xi1>, vector<8x8xf32>
    %70 = arith.addf %64, %69 : vector<8x8xf32>
    %c6_i32 = arith.constant 6 : i32
    %71 = vector.broadcast %c6_i32 : i32 to vector<8x8xi32>
    %72 = arith.cmpi eq, %21, %71 : vector<8x8xi32>
    %73 = vector.extract_strided_slice %33 {offsets = [0, 2], sizes = [8, 8], strides = [1, 1]} : vector<8x16xf32> to vector<8x8xf32>
    %cst_25 = arith.constant 0.000000e+00 : f32
    %74 = vector.broadcast %cst_25 : f32 to vector<8x8xf32>
    %75 = arith.select %72, %73, %74 : vector<8x8xi1>, vector<8x8xf32>
    %76 = arith.addf %70, %75 : vector<8x8xf32>
    %c7_i32 = arith.constant 7 : i32
    %77 = vector.broadcast %c7_i32 : i32 to vector<8x8xi32>
    %78 = arith.cmpi eq, %21, %77 : vector<8x8xi32>
    %79 = vector.extract_strided_slice %33 {offsets = [0, 1], sizes = [8, 8], strides = [1, 1]} : vector<8x16xf32> to vector<8x8xf32>
    %cst_26 = arith.constant 0.000000e+00 : f32
    %80 = vector.broadcast %cst_26 : f32 to vector<8x8xf32>
    %81 = arith.select %78, %79, %80 : vector<8x8xi1>, vector<8x8xf32>
    %82 = arith.addf %76, %81 : vector<8x8xf32>
    %83 = arith.addf %30, %82 : vector<8x8xf32>
    %cst_27 = arith.constant 2.500000e-01 : f32
    %84 = vector.broadcast %cst_27 : f32 to vector<8x8xf32>
    %85 = arith.mulf %83, %84 : vector<8x8xf32>
    %cst_28 = arith.constant dense<0xFF800000> : vector<8xf32>
    %86 = vector.multi_reduction <maximumf>, %85, %cst_28 [1] : vector<8x8xf32> to vector<8xf32>
    %87 = vector.shape_cast %86 : vector<8xf32> to vector<8x1xf32>
    %88 = vector.broadcast %87 : vector<8x1xf32> to vector<8x8xf32>
    %89 = arith.subf %85, %88 : vector<8x8xf32>
    %90 = math.exp %89 : vector<8x8xf32>
    %cst_29 = arith.constant dense<0.000000e+00> : vector<8xf32>
    %91 = vector.multi_reduction <add>, %90, %cst_29 [1] : vector<8x8xf32> to vector<8xf32>
    %92 = vector.shape_cast %91 : vector<8xf32> to vector<8x1xf32>
    %93 = tpu.reciprocal %92 {approx = true} : vector<8x1xf32> -> vector<8x1xf32>
    %94 = vector.broadcast %93 : vector<8x1xf32> to vector<8x8xf32>
    %95 = arith.mulf %90, %94 : vector<8x8xf32>
    %96 = arith.truncf %95 : vector<8x8xf32> to vector<8x8xbf16>
    %97 = arith.truncf %26 : vector<8x16xf32> to vector<8x16xbf16>
    %cst_30 = arith.constant dense<0.000000e+00> : vector<8x16xf32>
    %98 = tpu.matmul %96, %97, %cst_30 {dimension_numbers = #tpu.dot_dimension_numbers<[1], [0], [0], [1], [0, 0, 1, 1], [], []>} : vector<8x8xbf16>, vector<8x16xbf16>, vector<8x16xf32> -> vector<8x16xf32>
    %99 = arith.truncf %98 : vector<8x16xf32> to vector<8x16xbf16>
    %100 = vector.extract_strided_slice %20 {offsets = [0, 0], sizes = [16, 32], strides = [1, 1]} : vector<32x32xf32> to vector<16x32xf32>
    %101 = arith.truncf %100 : vector<16x32xf32> to vector<16x32xbf16>
    %cst_31 = arith.constant dense<0.000000e+00> : vector<8x32xf32>
    %102 = tpu.matmul %99, %101, %cst_31 {dimension_numbers = #tpu.dot_dimension_numbers<[1], [0], [0], [1], [0, 0, 1, 1], [], []>} : vector<8x16xbf16>, vector<16x32xbf16>, vector<8x32xf32> -> vector<8x32xf32>
    %103 = arith.addf %22, %102 : vector<8x32xf32>
    %104 = vector.extract_strided_slice %16 {offsets = [0, 16], sizes = [8, 16], strides = [1, 1]} : vector<8x32xf32> to vector<8x16xf32>
    %105 = vector.extract_strided_slice %19 {offsets = [0, 16], sizes = [8, 16], strides = [1, 1]} : vector<8x32xf32> to vector<8x16xf32>
    %106 = vector.extract_strided_slice %12 {offsets = [0, 16], sizes = [8, 16], strides = [1, 1]} : vector<8x32xf32> to vector<8x16xf32>
    %107 = vector.extract_strided_slice %13 {offsets = [0, 16], sizes = [8, 16], strides = [1, 1]} : vector<8x32xf32> to vector<8x16xf32>
    %108 = vector.extract_strided_slice %10 {offsets = [0, 16], sizes = [16, 16], strides = [1, 1]} : vector<16x32xf32> to vector<16x16xf32>
    %109 = arith.truncf %104 : vector<8x16xf32> to vector<8x16xbf16>
    %110 = arith.truncf %106 : vector<8x16xf32> to vector<8x16xbf16>
    %cst_32 = arith.constant dense<0.000000e+00> : vector<8x8xf32>
    %111 = tpu.matmul %109, %110, %cst_32 {dimension_numbers = #tpu.dot_dimension_numbers<[1], [1], [0], [0], [0, 0, 1, 0], [], []>} : vector<8x16xbf16>, vector<8x16xbf16>, vector<8x8xf32> -> vector<8x8xf32>
    %112 = arith.truncf %105 : vector<8x16xf32> to vector<8x16xbf16>
    %113 = arith.truncf %108 : vector<16x16xf32> to vector<16x16xbf16>
    %cst_33 = arith.constant dense<0.000000e+00> : vector<8x16xf32>
    %114 = tpu.matmul %112, %113, %cst_33 {dimension_numbers = #tpu.dot_dimension_numbers<[1], [1], [0], [0], [0, 0, 1, 0], [], []>} : vector<8x16xbf16>, vector<16x16xbf16>, vector<8x16xf32> -> vector<8x16xf32>
    %cst_34 = arith.constant 0.000000e+00 : f32
    %115 = vector.broadcast %cst_34 : f32 to vector<8x8xf32>
    %c0_i32_35 = arith.constant 0 : i32
    %116 = vector.broadcast %c0_i32_35 : i32 to vector<8x8xi32>
    %117 = arith.cmpi eq, %21, %116 : vector<8x8xi32>
    %118 = vector.extract_strided_slice %114 {offsets = [0, 8], sizes = [8, 8], strides = [1, 1]} : vector<8x16xf32> to vector<8x8xf32>
    %cst_36 = arith.constant 0.000000e+00 : f32
    %119 = vector.broadcast %cst_36 : f32 to vector<8x8xf32>
    %120 = arith.select %117, %118, %119 : vector<8x8xi1>, vector<8x8xf32>
    %121 = arith.addf %115, %120 : vector<8x8xf32>
    %c1_i32_37 = arith.constant 1 : i32
    %122 = vector.broadcast %c1_i32_37 : i32 to vector<8x8xi32>
    %123 = arith.cmpi eq, %21, %122 : vector<8x8xi32>
    %124 = vector.extract_strided_slice %114 {offsets = [0, 7], sizes = [8, 8], strides = [1, 1]} : vector<8x16xf32> to vector<8x8xf32>
    %cst_38 = arith.constant 0.000000e+00 : f32
    %125 = vector.broadcast %cst_38 : f32 to vector<8x8xf32>
    %126 = arith.select %123, %124, %125 : vector<8x8xi1>, vector<8x8xf32>
    %127 = arith.addf %121, %126 : vector<8x8xf32>
    %c2_i32_39 = arith.constant 2 : i32
    %128 = vector.broadcast %c2_i32_39 : i32 to vector<8x8xi32>
    %129 = arith.cmpi eq, %21, %128 : vector<8x8xi32>
    %130 = vector.extract_strided_slice %114 {offsets = [0, 6], sizes = [8, 8], strides = [1, 1]} : vector<8x16xf32> to vector<8x8xf32>
    %cst_40 = arith.constant 0.000000e+00 : f32
    %131 = vector.broadcast %cst_40 : f32 to vector<8x8xf32>
    %132 = arith.select %129, %130, %131 : vector<8x8xi1>, vector<8x8xf32>
    %133 = arith.addf %127, %132 : vector<8x8xf32>
    %c3_i32_41 = arith.constant 3 : i32
    %134 = vector.broadcast %c3_i32_41 : i32 to vector<8x8xi32>
    %135 = arith.cmpi eq, %21, %134 : vector<8x8xi32>
    %136 = vector.extract_strided_slice %114 {offsets = [0, 5], sizes = [8, 8], strides = [1, 1]} : vector<8x16xf32> to vector<8x8xf32>
    %cst_42 = arith.constant 0.000000e+00 : f32
    %137 = vector.broadcast %cst_42 : f32 to vector<8x8xf32>
    %138 = arith.select %135, %136, %137 : vector<8x8xi1>, vector<8x8xf32>
    %139 = arith.addf %133, %138 : vector<8x8xf32>
    %c4_i32_43 = arith.constant 4 : i32
    %140 = vector.broadcast %c4_i32_43 : i32 to vector<8x8xi32>
    %141 = arith.cmpi eq, %21, %140 : vector<8x8xi32>
    %142 = vector.extract_strided_slice %114 {offsets = [0, 4], sizes = [8, 8], strides = [1, 1]} : vector<8x16xf32> to vector<8x8xf32>
    %cst_44 = arith.constant 0.000000e+00 : f32
    %143 = vector.broadcast %cst_44 : f32 to vector<8x8xf32>
    %144 = arith.select %141, %142, %143 : vector<8x8xi1>, vector<8x8xf32>
    %145 = arith.addf %139, %144 : vector<8x8xf32>
    %c5_i32_45 = arith.constant 5 : i32
    %146 = vector.broadcast %c5_i32_45 : i32 to vector<8x8xi32>
    %147 = arith.cmpi eq, %21, %146 : vector<8x8xi32>
    %148 = vector.extract_strided_slice %114 {offsets = [0, 3], sizes = [8, 8], strides = [1, 1]} : vector<8x16xf32> to vector<8x8xf32>
    %cst_46 = arith.constant 0.000000e+00 : f32
    %149 = vector.broadcast %cst_46 : f32 to vector<8x8xf32>
    %150 = arith.select %147, %148, %149 : vector<8x8xi1>, vector<8x8xf32>
    %151 = arith.addf %145, %150 : vector<8x8xf32>
    %c6_i32_47 = arith.constant 6 : i32
    %152 = vector.broadcast %c6_i32_47 : i32 to vector<8x8xi32>
    %153 = arith.cmpi eq, %21, %152 : vector<8x8xi32>
    %154 = vector.extract_strided_slice %114 {offsets = [0, 2], sizes = [8, 8], strides = [1, 1]} : vector<8x16xf32> to vector<8x8xf32>
    %cst_48 = arith.constant 0.000000e+00 : f32
    %155 = vector.broadcast %cst_48 : f32 to vector<8x8xf32>
    %156 = arith.select %153, %154, %155 : vector<8x8xi1>, vector<8x8xf32>
    %157 = arith.addf %151, %156 : vector<8x8xf32>
    %c7_i32_49 = arith.constant 7 : i32
    %158 = vector.broadcast %c7_i32_49 : i32 to vector<8x8xi32>
    %159 = arith.cmpi eq, %21, %158 : vector<8x8xi32>
    %160 = vector.extract_strided_slice %114 {offsets = [0, 1], sizes = [8, 8], strides = [1, 1]} : vector<8x16xf32> to vector<8x8xf32>
    %cst_50 = arith.constant 0.000000e+00 : f32
    %161 = vector.broadcast %cst_50 : f32 to vector<8x8xf32>
    %162 = arith.select %159, %160, %161 : vector<8x8xi1>, vector<8x8xf32>
    %163 = arith.addf %157, %162 : vector<8x8xf32>
    %164 = arith.addf %111, %163 : vector<8x8xf32>
    %cst_51 = arith.constant 2.500000e-01 : f32
    %165 = vector.broadcast %cst_51 : f32 to vector<8x8xf32>
    %166 = arith.mulf %164, %165 : vector<8x8xf32>
    %cst_52 = arith.constant dense<0xFF800000> : vector<8xf32>
    %167 = vector.multi_reduction <maximumf>, %166, %cst_52 [1] : vector<8x8xf32> to vector<8xf32>
    %168 = vector.shape_cast %167 : vector<8xf32> to vector<8x1xf32>
    %169 = vector.broadcast %168 : vector<8x1xf32> to vector<8x8xf32>
    %170 = arith.subf %166, %169 : vector<8x8xf32>
    %171 = math.exp %170 : vector<8x8xf32>
    %cst_53 = arith.constant dense<0.000000e+00> : vector<8xf32>
    %172 = vector.multi_reduction <add>, %171, %cst_53 [1] : vector<8x8xf32> to vector<8xf32>
    %173 = vector.shape_cast %172 : vector<8xf32> to vector<8x1xf32>
    %174 = tpu.reciprocal %173 {approx = true} : vector<8x1xf32> -> vector<8x1xf32>
    %175 = vector.broadcast %174 : vector<8x1xf32> to vector<8x8xf32>
    %176 = arith.mulf %171, %175 : vector<8x8xf32>
    %177 = arith.truncf %176 : vector<8x8xf32> to vector<8x8xbf16>
    %178 = arith.truncf %107 : vector<8x16xf32> to vector<8x16xbf16>
    %cst_54 = arith.constant dense<0.000000e+00> : vector<8x16xf32>
    %179 = tpu.matmul %177, %178, %cst_54 {dimension_numbers = #tpu.dot_dimension_numbers<[1], [0], [0], [1], [0, 0, 1, 1], [], []>} : vector<8x8xbf16>, vector<8x16xbf16>, vector<8x16xf32> -> vector<8x16xf32>
    %180 = arith.truncf %179 : vector<8x16xf32> to vector<8x16xbf16>
    %181 = vector.extract_strided_slice %20 {offsets = [16, 0], sizes = [16, 32], strides = [1, 1]} : vector<32x32xf32> to vector<16x32xf32>
    %182 = arith.truncf %181 : vector<16x32xf32> to vector<16x32xbf16>
    %cst_55 = arith.constant dense<0.000000e+00> : vector<8x32xf32>
    %183 = tpu.matmul %180, %182, %cst_55 {dimension_numbers = #tpu.dot_dimension_numbers<[1], [0], [0], [1], [0, 0, 1, 1], [], []>} : vector<8x16xbf16>, vector<16x32xbf16>, vector<8x32xf32> -> vector<8x32xf32>
    %184 = arith.addf %103, %183 : vector<8x32xf32>
    %185 = arith.addf %184, %1 : vector<8x32xf32>
    %c0_56 = arith.constant 0 : index
    %c0_57 = arith.constant 0 : index
    %186 = vector.load %arg8[%c0_56, %c0_57] : memref<1x32xf32, #tpu.memory_space<vmem>>, vector<1x32xf32>
    %c0_58 = arith.constant 0 : index
    %c0_59 = arith.constant 0 : index
    %187 = vector.load %arg9[%c0_58, %c0_59] : memref<1x32xf32, #tpu.memory_space<vmem>>, vector<1x32xf32>
    %cst_60 = arith.constant dense<0.000000e+00> : vector<8xf32>
    %188 = vector.multi_reduction <add>, %185, %cst_60 [1] : vector<8x32xf32> to vector<8xf32>
    %189 = vector.shape_cast %188 : vector<8xf32> to vector<8x1xf32>
    %cst_61 = arith.constant 3.200000e+01 : f32
    %190 = vector.broadcast %cst_61 : f32 to vector<8x1xf32>
    %191 = arith.divf %189, %190 : vector<8x1xf32>
    %192 = vector.broadcast %191 : vector<8x1xf32> to vector<8x32xf32>
    %193 = arith.subf %185, %192 : vector<8x32xf32>
    %194 = arith.mulf %193, %193 : vector<8x32xf32>
    %cst_62 = arith.constant dense<0.000000e+00> : vector<8xf32>
    %195 = vector.multi_reduction <add>, %194, %cst_62 [1] : vector<8x32xf32> to vector<8xf32>
    %196 = vector.shape_cast %195 : vector<8xf32> to vector<8x1xf32>
    %cst_63 = arith.constant 3.200000e+01 : f32
    %197 = vector.broadcast %cst_63 : f32 to vector<8x1xf32>
    %198 = arith.divf %196, %197 : vector<8x1xf32>
    %199 = vector.broadcast %191 : vector<8x1xf32> to vector<8x32xf32>
    %200 = arith.subf %185, %199 : vector<8x32xf32>
    %cst_64 = arith.constant 9.99999996E-13 : f32
    %201 = vector.broadcast %cst_64 : f32 to vector<8x1xf32>
    %202 = arith.addf %198, %201 : vector<8x1xf32>
    %203 = math.rsqrt %202 : vector<8x1xf32>
    %204 = vector.broadcast %203 : vector<8x1xf32> to vector<8x32xf32>
    %205 = arith.mulf %200, %204 : vector<8x32xf32>
    %206 = vector.broadcast %186 : vector<1x32xf32> to vector<8x32xf32>
    %207 = arith.mulf %205, %206 : vector<8x32xf32>
    %208 = vector.broadcast %187 : vector<1x32xf32> to vector<8x32xf32>
    %209 = arith.addf %207, %208 : vector<8x32xf32>
    %210 = arith.truncf %209 : vector<8x32xf32> to vector<8x32xbf16>
    %c0_65 = arith.constant 0 : index
    %c0_66 = arith.constant 0 : index
    %211 = vector.load %arg10[%c0_65, %c0_66] : memref<32x64xf32, #tpu.memory_space<vmem>>, vector<32x64xf32>
    %212 = arith.truncf %211 : vector<32x64xf32> to vector<32x64xbf16>
    %cst_67 = arith.constant dense<0.000000e+00> : vector<8x64xf32>
    %213 = tpu.matmul %210, %212, %cst_67 {dimension_numbers = #tpu.dot_dimension_numbers<[1], [0], [0], [1], [0, 0, 1, 1], [], []>} : vector<8x32xbf16>, vector<32x64xbf16>, vector<8x64xf32> -> vector<8x64xf32>
    %c0_68 = arith.constant 0 : index
    %c0_69 = arith.constant 0 : index
    %214 = vector.load %arg11[%c0_68, %c0_69] : memref<1x64xf32, #tpu.memory_space<vmem>>, vector<1x64xf32>
    %215 = vector.broadcast %214 : vector<1x64xf32> to vector<8x64xf32>
    %216 = arith.addf %213, %215 : vector<8x64xf32>
    %cst_70 = arith.constant 5.000000e-01 : f32
    %217 = vector.broadcast %cst_70 : f32 to vector<8x64xf32>
    %218 = arith.mulf %217, %216 : vector<8x64xf32>
    %cst_71 = arith.constant 0.707106769 : f32
    %219 = vector.broadcast %cst_71 : f32 to vector<8x64xf32>
    %220 = arith.mulf %216, %219 : vector<8x64xf32>
    %221 = math.absf %220 : vector<8x64xf32>
    %cst_72 = arith.constant 0.327591091 : f32
    %222 = vector.broadcast %cst_72 : f32 to vector<8x64xf32>
    %223 = arith.mulf %222, %221 : vector<8x64xf32>
    %cst_73 = arith.constant 1.000000e+00 : f32
    %224 = vector.broadcast %cst_73 : f32 to vector<8x64xf32>
    %225 = arith.addf %224, %223 : vector<8x64xf32>
    %cst_74 = arith.constant 1.000000e+00 : f32
    %226 = vector.broadcast %cst_74 : f32 to vector<8x64xf32>
    %227 = arith.divf %226, %225 : vector<8x64xf32>
    %cst_75 = arith.constant 1.06140542 : f32
    %228 = vector.broadcast %cst_75 : f32 to vector<8x64xf32>
    %229 = arith.mulf %228, %227 : vector<8x64xf32>
    %cst_76 = arith.constant -1.45315206 : f32
    %230 = vector.broadcast %cst_76 : f32 to vector<8x64xf32>
    %231 = arith.addf %229, %230 : vector<8x64xf32>
    %232 = arith.mulf %231, %227 : vector<8x64xf32>
    %cst_77 = arith.constant 1.42141378 : f32
    %233 = vector.broadcast %cst_77 : f32 to vector<8x64xf32>
    %234 = arith.addf %232, %233 : vector<8x64xf32>
    %235 = arith.mulf %234, %227 : vector<8x64xf32>
    %cst_78 = arith.constant -0.284496725 : f32
    %236 = vector.broadcast %cst_78 : f32 to vector<8x64xf32>
    %237 = arith.addf %235, %236 : vector<8x64xf32>
    %238 = arith.mulf %237, %227 : vector<8x64xf32>
    %cst_79 = arith.constant 0.254829586 : f32
    %239 = vector.broadcast %cst_79 : f32 to vector<8x64xf32>
    %240 = arith.addf %238, %239 : vector<8x64xf32>
    %241 = arith.mulf %240, %227 : vector<8x64xf32>
    %cst_80 = arith.constant 0.000000e+00 : f32
    %242 = vector.broadcast %cst_80 : f32 to vector<8x64xf32>
    %243 = arith.subf %242, %221 : vector<8x64xf32>
    %244 = arith.mulf %243, %221 : vector<8x64xf32>
    %245 = math.exp %244 : vector<8x64xf32>
    %246 = arith.mulf %241, %245 : vector<8x64xf32>
    %cst_81 = arith.constant 1.000000e+00 : f32
    %247 = vector.broadcast %cst_81 : f32 to vector<8x64xf32>
    %248 = arith.subf %247, %246 : vector<8x64xf32>
    %cst_82 = arith.constant 0.000000e+00 : f32
    %249 = vector.broadcast %cst_82 : f32 to vector<8x64xf32>
    %250 = arith.cmpf oge, %220, %249 : vector<8x64xf32>
    %cst_83 = arith.constant 0.000000e+00 : f32
    %251 = vector.broadcast %cst_83 : f32 to vector<8x64xf32>
    %252 = arith.subf %251, %248 : vector<8x64xf32>
    %253 = arith.select %250, %248, %252 : vector<8x64xi1>, vector<8x64xf32>
    %cst_84 = arith.constant 1.000000e+00 : f32
    %254 = vector.broadcast %cst_84 : f32 to vector<8x64xf32>
    %255 = arith.addf %254, %253 : vector<8x64xf32>
    %256 = arith.mulf %218, %255 : vector<8x64xf32>
    %257 = arith.truncf %256 : vector<8x64xf32> to vector<8x64xbf16>
    %c0_85 = arith.constant 0 : index
    %c0_86 = arith.constant 0 : index
    %258 = vector.load %arg12[%c0_85, %c0_86] : memref<64x32xf32, #tpu.memory_space<vmem>>, vector<64x32xf32>
    %259 = arith.truncf %258 : vector<64x32xf32> to vector<64x32xbf16>
    %cst_87 = arith.constant dense<0.000000e+00> : vector<8x32xf32>
    %260 = tpu.matmul %257, %259, %cst_87 {dimension_numbers = #tpu.dot_dimension_numbers<[1], [0], [0], [1], [0, 0, 1, 1], [], []>} : vector<8x64xbf16>, vector<64x32xbf16>, vector<8x32xf32> -> vector<8x32xf32>
    %c0_88 = arith.constant 0 : index
    %c0_89 = arith.constant 0 : index
    %261 = vector.load %arg13[%c0_88, %c0_89] : memref<1x32xf32, #tpu.memory_space<vmem>>, vector<1x32xf32>
    %262 = vector.broadcast %261 : vector<1x32xf32> to vector<8x32xf32>
    %263 = arith.addf %260, %262 : vector<8x32xf32>
    %264 = arith.addf %263, %209 : vector<8x32xf32>
    %c0_90 = arith.constant 0 : index
    %c0_91 = arith.constant 0 : index
    %265 = vector.load %arg14[%c0_90, %c0_91] : memref<1x32xf32, #tpu.memory_space<vmem>>, vector<1x32xf32>
    %c0_92 = arith.constant 0 : index
    %c0_93 = arith.constant 0 : index
    %266 = vector.load %arg15[%c0_92, %c0_93] : memref<1x32xf32, #tpu.memory_space<vmem>>, vector<1x32xf32>
    %cst_94 = arith.constant dense<0.000000e+00> : vector<8xf32>
    %267 = vector.multi_reduction <add>, %264, %cst_94 [1] : vector<8x32xf32> to vector<8xf32>
    %268 = vector.shape_cast %267 : vector<8xf32> to vector<8x1xf32>
    %cst_95 = arith.constant 3.200000e+01 : f32
    %269 = vector.broadcast %cst_95 : f32 to vector<8x1xf32>
    %270 = arith.divf %268, %269 : vector<8x1xf32>
    %271 = vector.broadcast %270 : vector<8x1xf32> to vector<8x32xf32>
    %272 = arith.subf %264, %271 : vector<8x32xf32>
    %273 = arith.mulf %272, %272 : vector<8x32xf32>
    %cst_96 = arith.constant dense<0.000000e+00> : vector<8xf32>
    %274 = vector.multi_reduction <add>, %273, %cst_96 [1] : vector<8x32xf32> to vector<8xf32>
    %275 = vector.shape_cast %274 : vector<8xf32> to vector<8x1xf32>
    %cst_97 = arith.constant 3.200000e+01 : f32
    %276 = vector.broadcast %cst_97 : f32 to vector<8x1xf32>
    %277 = arith.divf %275, %276 : vector<8x1xf32>
    %278 = vector.broadcast %270 : vector<8x1xf32> to vector<8x32xf32>
    %279 = arith.subf %264, %278 : vector<8x32xf32>
    %cst_98 = arith.constant 9.99999996E-13 : f32
    %280 = vector.broadcast %cst_98 : f32 to vector<8x1xf32>
    %281 = arith.addf %277, %280 : vector<8x1xf32>
    %282 = math.rsqrt %281 : vector<8x1xf32>
    %283 = vector.broadcast %282 : vector<8x1xf32> to vector<8x32xf32>
    %284 = arith.mulf %279, %283 : vector<8x32xf32>
    %285 = vector.broadcast %265 : vector<1x32xf32> to vector<8x32xf32>
    %286 = arith.mulf %284, %285 : vector<8x32xf32>
    %287 = vector.broadcast %266 : vector<1x32xf32> to vector<8x32xf32>
    %288 = arith.addf %286, %287 : vector<8x32xf32>
    %c0_99 = arith.constant 0 : index
    %c0_100 = arith.constant 0 : index
    %c0_101 = arith.constant 0 : index
    %289 = vector.load %arg16[%c0_99, %c0_100, %c0_101] : memref<1x8x32xf32, #tpu.memory_space<vmem>>, vector<1x8x32xf32>
    %290 = vector.shape_cast %289 : vector<1x8x32xf32> to vector<8x32xf32>
    %291 = vector.shape_cast %288 : vector<8x32xf32> to vector<1x8x32xf32>
    tpu.vector_store %arg16[%c0_99, %c0_100, %c0_101], %291 {strides = array<i32>} : memref<1x8x32xf32, #tpu.memory_space<vmem>>, vector<1x8x32xf32>,
    return
  }
  func.func @transform_0(%arg0: i32) -> (i32, i32, i32) {
    %c0_i32 = arith.constant 0 : i32
    %c0_i32_0 = arith.constant 0 : i32
    %c0_i32_1 = arith.constant 0 : i32
    return %arg0, %c0_i32, %c0_i32_0 : i32, i32, i32
  }
  func.func @transform_1(%arg0: i32) -> (i32, i32) {
    %c0_i32 = arith.constant 0 : i32
    %c0_i32_0 = arith.constant 0 : i32
    %c0_i32_1 = arith.constant 0 : i32
    return %c0_i32, %c0_i32_0 : i32, i32
  }
  func.func @transform_2(%arg0: i32) -> (i32, i32) {
    %c0_i32 = arith.constant 0 : i32
    %c0_i32_0 = arith.constant 0 : i32
    %c0_i32_1 = arith.constant 0 : i32
    return %c0_i32, %c0_i32_0 : i32, i32
  }
  func.func @transform_3(%arg0: i32) -> (i32, i32) {
    %c0_i32 = arith.constant 0 : i32
    %c0_i32_0 = arith.constant 0 : i32
    %c0_i32_1 = arith.constant 0 : i32
    return %c0_i32, %c0_i32_0 : i32, i32
  }
  func.func @transform_4(%arg0: i32) -> (i32, i32) {
    %c0_i32 = arith.constant 0 : i32
    %c0_i32_0 = arith.constant 0 : i32
    %c0_i32_1 = arith.constant 0 : i32
    return %c0_i32, %c0_i32_0 : i32, i32
  }
  func.func @transform_5(%arg0: i32) -> (i32, i32) {
    %c0_i32 = arith.constant 0 : i32
    %c0_i32_0 = arith.constant 0 : i32
    %c0_i32_1 = arith.constant 0 : i32
    return %c0_i32, %c0_i32_0 : i32, i32
  }
  func.func @transform_6(%arg0: i32) -> (i32, i32) {
    %c0_i32 = arith.constant 0 : i32
    %c0_i32_0 = arith.constant 0 : i32
    %c0_i32_1 = arith.constant 0 : i32
    return %c0_i32, %c0_i32_0 : i32, i32
  }
  func.func @transform_7(%arg0: i32) -> (i32, i32) {
    %c0_i32 = arith.constant 0 : i32
    %c0_i32_0 = arith.constant 0 : i32
    %c0_i32_1 = arith.constant 0 : i32
    return %c0_i32, %c0_i32_0 : i32, i32
  }
  func.func @transform_8(%arg0: i32) -> (i32, i32) {
    %c0_i32 = arith.constant 0 : i32
    %c0_i32_0 = arith.constant 0 : i32
    %c0_i32_1 = arith.constant 0 : i32
    return %c0_i32, %c0_i32_0 : i32, i32
  }
  func.func @transform_9(%arg0: i32) -> (i32, i32) {
    %c0_i32 = arith.constant 0 : i32
    %c0_i32_0 = arith.constant 0 : i32
    %c0_i32_1 = arith.constant 0 : i32
    return %c0_i32, %c0_i32_0 : i32, i32
  }
  func.func @transform_10(%arg0: i32) -> (i32, i32) {
    %c0_i32 = arith.constant 0 : i32
    %c0_i32_0 = arith.constant 0 : i32
    %c0_i32_1 = arith.constant 0 : i32
    return %c0_i32, %c0_i32_0 : i32, i32
  }
  func.func @transform_11(%arg0: i32) -> (i32, i32) {
    %c0_i32 = arith.constant 0 : i32
    %c0_i32_0 = arith.constant 0 : i32
    %c0_i32_1 = arith.constant 0 : i32
    return %c0_i32, %c0_i32_0 : i32, i32
  }
  func.func @transform_12(%arg0: i32) -> (i32, i32) {
    %c0_i32 = arith.constant 0 : i32
    %c0_i32_0 = arith.constant 0 : i32
    %c0_i32_1 = arith.constant 0 : i32
    return %c0_i32, %c0_i32_0 : i32, i32
  }
  func.func @transform_13(%arg0: i32) -> (i32, i32) {
    %c0_i32 = arith.constant 0 : i32
    %c0_i32_0 = arith.constant 0 : i32
    %c0_i32_1 = arith.constant 0 : i32
    return %c0_i32, %c0_i32_0 : i32, i32
  }
  func.func @transform_14(%arg0: i32) -> (i32, i32) {
    %c0_i32 = arith.constant 0 : i32
    %c0_i32_0 = arith.constant 0 : i32
    %c0_i32_1 = arith.constant 0 : i32
    return %c0_i32, %c0_i32_0 : i32, i32
  }
  func.func @transform_15(%arg0: i32) -> (i32, i32, i32) {
    %c0_i32 = arith.constant 0 : i32
    %c0_i32_0 = arith.constant 0 : i32
    %c0_i32_1 = arith.constant 0 : i32
    return %arg0, %c0_i32, %c0_i32_0 : i32, i32, i32
  }
}

</mosaic_0001>

<llo_original>
// kernel: wrap_xlnet_forward.2
$region0: #{wrap_xlnet_forward.2}
  #allocation0 [shape = 'u32[]', space=smem, size = 0x4, offset = 0x4, fixed_abs, tag = 'smem constant byte address 0x4 - core index']
  #allocation1 [shape = 'u32[144,128]{1,0:T(1,128)}', space=vmem, size = 0x12000, scoped, tag = 'internal scratch']
  %s0 = inlined_call_operand.vmem [shape: f32[2,8,32], index: 0, kind: input, shape index: {}]
  %s1 = inlined_call_operand.vmem [shape: f32[16,32], index: 1, kind: input, shape index: {}]
  %s2 = inlined_call_operand.vmem [shape: f32[32,96], index: 2, kind: input, shape index: {}]
  %s3 = inlined_call_operand.vmem [shape: f32[32,32], index: 3, kind: input, shape index: {}]
  %s4 = inlined_call_operand.vmem [shape: f32[1,32], index: 4, kind: input, shape index: {}]
  %s5 = inlined_call_operand.vmem [shape: f32[1,32], index: 5, kind: input, shape index: {}]
  %s6 = inlined_call_operand.vmem [shape: f32[32,32], index: 6, kind: input, shape index: {}]
  %s7 = inlined_call_operand.vmem [shape: f32[1,32], index: 7, kind: input, shape index: {}]
  %s8 = inlined_call_operand.vmem [shape: f32[1,32], index: 8, kind: input, shape index: {}]
  %s9 = inlined_call_operand.vmem [shape: f32[32,64], index: 9, kind: input, shape index: {}]
  %s10 = inlined_call_operand.vmem [shape: f32[1,64], index: 10, kind: input, shape index: {}]
  %s11 = inlined_call_operand.vmem [shape: f32[64,32], index: 11, kind: input, shape index: {}]
  %s12 = inlined_call_operand.vmem [shape: f32[1,32], index: 12, kind: input, shape index: {}]
  %s13 = inlined_call_operand.vmem [shape: f32[1,32], index: 13, kind: input, shape index: {}]
  %s14 = inlined_call_operand.vmem [shape: f32[1,32], index: 14, kind: input, shape index: {}]
  %s15 = inlined_call_operand.vmem [shape: f32[2,8,32], index: 15, kind: output, shape index: {}]
  %s16 = sld [smem:[#allocation0]]
  $region93: #{wrap_xlnet_forward.2} parent=0
    _
  %s18 = ssub.s32 1, %s16
  %s19 = scalar_select 0, %s18, %s16
  loop: start=0, step=1, limit=4
  $region2: #{wrap_xlnet_forward.2} parent=0 // loop_pre_header
    _
  $region3: #{wrap_xlnet_forward.2} parent=0 // loop_header
    %s21 = sphi 0, %s25
    %p22 = scmp.ge.s32.totalorder %s21, 4
    %s31 = sphi 0, %s33
    %s34 = sphi 0, %s31
    %s35 = sphi 0, %s34
    %s51 = sphi 0, %s35
    %s55 = sphi 0, %s55
    %s57 = sphi 0, %s55
    %s58 = sphi 0, %s57
    %s72 = sphi 0, %s58
    %s76 = sphi 0, %s76
    %s78 = sphi 0, %s76
    %s79 = sphi 0, %s78
    %s93 = sphi 0, %s79
    %s97 = sphi 0, %s97
    %s99 = sphi 0, %s97
    %s100 = sphi 0, %s99
    %s114 = sphi 0, %s100
    %s118 = sphi 0, %s118
    %s120 = sphi 0, %s118
    %s121 = sphi 0, %s120
    %s135 = sphi 0, %s121
    %s139 = sphi 0, %s139
    %s141 = sphi 0, %s139
    %s142 = sphi 0, %s141
    %s156 = sphi 0, %s142
    %s160 = sphi 0, %s160
    %s162 = sphi 0, %s160
    %s163 = sphi 0, %s162
    %s177 = sphi 0, %s163
    %s181 = sphi 0, %s181
    %s183 = sphi 0, %s181
    %s184 = sphi 0, %s183
    %s198 = sphi 0, %s184
    %s202 = sphi 0, %s202
    %s204 = sphi 0, %s202
    %s205 = sphi 0, %s204
    %s219 = sphi 0, %s205
    %s223 = sphi 0, %s223
    %s225 = sphi 0, %s223
    %s226 = sphi 0, %s225
    %s240 = sphi 0, %s226
    %s244 = sphi 0, %s244
    %s246 = sphi 0, %s244
    %s247 = sphi 0, %s246
    %s261 = sphi 0, %s247
    %s265 = sphi 0, %s265
    %s267 = sphi 0, %s265
    %s268 = sphi 0, %s267
    %s282 = sphi 0, %s268
    %s286 = sphi 0, %s286
    %s288 = sphi 0, %s286
    %s289 = sphi 0, %s288
    %s303 = sphi 0, %s289
    %s307 = sphi 0, %s307
    %s309 = sphi 0, %s307
    %s310 = sphi 0, %s309
    %s324 = sphi 0, %s310
    %s328 = sphi 0, %s328
    %s330 = sphi 0, %s328
    %s331 = sphi 0, %s330
    %s345 = sphi 0, %s331
    %s351 = sphi 0, %s353
    %s354 = sphi 0, %s351
    %s355 = sphi 0, %s354
    %s371 = sphi 0, %s355
  $region4: #{wrap_xlnet_forward.2} parent=0 // loop_header_branch
    %24 = sbr.rel (%p22) target = $region8
  $region5: #{wrap_xlnet_forward.2} parent=0 // loop_body
    %s26 = ssub.s32 %s21, 1
    %s27 = ssub.s32 %s21, 2
    %s28 = sadd.s32 %s21, 1
    %s29 = ssub.s32 %s21, %s28
    %p30 = scmp.eq.s32.totalorder %s29, 0
    %s32 = sadd.s32 %s31, 1
    %s33 = scalar_select %p30, %s31, %s32
    %p36 = pneg %p30
    %p37 = scmp.eq.s32.totalorder %s21, 1
    %p38 = por %p36, %p37
    %p39 = scmp.ne.s32.totalorder %s31, %s34
    %p40 = scmp.eq.s32.totalorder %s21, 0
    %p41 = por %p39, %p40
    %p42 = scmp.ne.s32.totalorder %s31, %s34
    %p43 = scmp.eq.s32.totalorder %s26, 1
    %p44 = por %p42, %p43
    %p45 = scmp.ne.s32.totalorder %s34, %s35
    %p46 = scmp.eq.s32.totalorder %s26, 0
    %p47 = por %p45, %p46
    %p48 = scmp.ne.s32.totalorder %s34, %s35
    %p49 = scmp.eq.s32.totalorder %s27, 1
    %p50 = por %p48, %p49
    %p52 = scmp.ne.s32.totalorder %s35, %s51
    %p53 = scmp.eq.s32.totalorder %s27, 0
    %p54 = por %p52, %p53
    %s56 = sadd.s32 %s55, 1
    %p59 = scmp.eq.s32.totalorder %s21, 1
    %p60 = scmp.ne.s32.totalorder %s55, %s57
    %p61 = scmp.eq.s32.totalorder %s21, 0
    %p62 = por %p60, %p61
    %p63 = scmp.ne.s32.totalorder %s55, %s57
    %p64 = scmp.eq.s32.totalorder %s26, 1
    %p65 = por %p63, %p64
    %p66 = scmp.ne.s32.totalorder %s57, %s58
    %p67 = scmp.eq.s32.totalorder %s26, 0
    %p68 = por %p66, %p67
    %p69 = scmp.ne.s32.totalorder %s57, %s58
    %p70 = scmp.eq.s32.totalorder %s27, 1
    %p71 = por %p69, %p70
    %p73 = scmp.ne.s32.totalorder %s58, %s72
    %p74 = scmp.eq.s32.totalorder %s27, 0
    %p75 = por %p73, %p74
    %s77 = sadd.s32 %s76, 1
    %p80 = scmp.eq.s32.totalorder %s21, 1
    %p81 = scmp.ne.s32.totalorder %s76, %s78
    %p82 = scmp.eq.s32.totalorder %s21, 0
    %p83 = por %p81, %p82
    %p84 = scmp.ne.s32.totalorder %s76, %s78
    %p85 = scmp.eq.s32.totalorder %s26, 1
    %p86 = por %p84, %p85
    %p87 = scmp.ne.s32.totalorder %s78, %s79
    %p88 = scmp.eq.s32.totalorder %s26, 0
    %p89 = por %p87, %p88
    %p90 = scmp.ne.s32.totalorder %s78, %s79
    %p91 = scmp.eq.s32.totalorder %s27, 1
    %p92 = por %p90, %p91
    %p94 = scmp.ne.s32.totalorder %s79, %s93
    %p95 = scmp.eq.s32.totalorder %s27, 0
    %p96 = por %p94, %p95
    %s98 = sadd.s32 %s97, 1
    %p101 = scmp.eq.s32.totalorder %s21, 1
    %p102 = scmp.ne.s32.totalorder %s97, %s99
    %p103 = scmp.eq.s32.totalorder %s21, 0
    %p104 = por %p102, %p103
    %p105 = scmp.ne.s32.totalorder %s97, %s99
    %p106 = scmp.eq.s32.totalorder %s26, 1
    %p107 = por %p105, %p106
    %p108 = scmp.ne.s32.totalorder %s99, %s100
    %p109 = scmp.eq.s32.totalorder %s26, 0
    %p110 = por %p108, %p109
    %p111 = scmp.ne.s32.totalorder %s99, %s100
    %p112 = scmp.eq.s32.totalorder %s27, 1
    %p113 = por %p111, %p112
    %p115 = scmp.ne.s32.totalorder %s100, %s114
    %p116 = scmp.eq.s32.totalorder %s27, 0
    %p117 = por %p115, %p116
    %s119 = sadd.s32 %s118, 1
    %p122 = scmp.eq.s32.totalorder %s21, 1
    %p123 = scmp.ne.s32.totalorder %s118, %s120
    %p124 = scmp.eq.s32.totalorder %s21, 0
    %p125 = por %p123, %p124
    %p126 = scmp.ne.s32.totalorder %s118, %s120
    %p127 = scmp.eq.s32.totalorder %s26, 1
    %p128 = por %p126, %p127
    %p129 = scmp.ne.s32.totalorder %s120, %s121
    %p130 = scmp.eq.s32.totalorder %s26, 0
    %p131 = por %p129, %p130
    %p132 = scmp.ne.s32.totalorder %s120, %s121
    %p133 = scmp.eq.s32.totalorder %s27, 1
    %p134 = por %p132, %p133
    %p136 = scmp.ne.s32.totalorder %s121, %s135
    %p137 = scmp.eq.s32.totalorder %s27, 0
    %p138 = por %p136, %p137
    %s140 = sadd.s32 %s139, 1
    %p143 = scmp.eq.s32.totalorder %s21, 1
    %p144 = scmp.ne.s32.totalorder %s139, %s141
    %p145 = scmp.eq.s32.totalorder %s21, 0
    %p146 = por %p144, %p145
    %p147 = scmp.ne.s32.totalorder %s139, %s141
    %p148 = scmp.eq.s32.totalorder %s26, 1
    %p149 = por %p147, %p148
    %p150 = scmp.ne.s32.totalorder %s141, %s142
    %p151 = scmp.eq.s32.totalorder %s26, 0
    %p152 = por %p150, %p151
    %p153 = scmp.ne.s32.totalorder %s141, %s142
    %p154 = scmp.eq.s32.totalorder %s27, 1
    %p155 = por %p153, %p154
    %p157 = scmp.ne.s32.totalorder %s142, %s156
    %p158 = scmp.eq.s32.totalorder %s27, 0
    %p159 = por %p157, %p158
    %s161 = sadd.s32 %s160, 1
    %p164 = scmp.eq.s32.totalorder %s21, 1
    %p165 = scmp.ne.s32.totalorder %s160, %s162
    %p166 = scmp.eq.s32.totalorder %s21, 0
    %p167 = por %p165, %p166
    %p168 = scmp.ne.s32.totalorder %s160, %s162
    %p169 = scmp.eq.s32.totalorder %s26, 1
    %p170 = por %p168, %p169
    %p171 = scmp.ne.s32.totalorder %s162, %s163
    %p172 = scmp.eq.s32.totalorder %s26, 0
    %p173 = por %p171, %p172
    %p174 = scmp.ne.s32.totalorder %s162, %s163
    %p175 = scmp.eq.s32.totalorder %s27, 1
    %p176 = por %p174, %p175
    %p178 = scmp.ne.s32.totalorder %s163, %s177
    %p179 = scmp.eq.s32.totalorder %s27, 0
    %p180 = por %p178, %p179
    %s182 = sadd.s32 %s181, 1
    %p185 = scmp.eq.s32.totalorder %s21, 1
    %p186 = scmp.ne.s32.totalorder %s181, %s183
    %p187 = scmp.eq.s32.totalorder %s21, 0
    %p188 = por %p186, %p187
    %p189 = scmp.ne.s32.totalorder %s181, %s183
    %p190 = scmp.eq.s32.totalorder %s26, 1
    %p191 = por %p189, %p190
    %p192 = scmp.ne.s32.totalorder %s183, %s184
    %p193 = scmp.eq.s32.totalorder %s26, 0
    %p194 = por %p192, %p193
    %p195 = scmp.ne.s32.totalorder %s183, %s184
    %p196 = scmp.eq.s32.totalorder %s27, 1
    %p197 = por %p195, %p196
    %p199 = scmp.ne.s32.totalorder %s184, %s198
    %p200 = scmp.eq.s32.totalorder %s27, 0
    %p201 = por %p199, %p200
    %s203 = sadd.s32 %s202, 1
    %p206 = scmp.eq.s32.totalorder %s21, 1
    %p207 = scmp.ne.s32.totalorder %s202, %s204
    %p208 = scmp.eq.s32.totalorder %s21, 0
    %p209 = por %p207, %p208
    %p210 = scmp.ne.s32.totalorder %s202, %s204
    %p211 = scmp.eq.s32.totalorder %s26, 1
    %p212 = por %p210, %p211
    %p213 = scmp.ne.s32.totalorder %s204, %s205
    %p214 = scmp.eq.s32.totalorder %s26, 0
    %p215 = por %p213, %p214
    %p216 = scmp.ne.s32.totalorder %s204, %s205
    %p217 = scmp.eq.s32.totalorder %s27, 1
    %p218 = por %p216, %p217
    %p220 = scmp.ne.s32.totalorder %s205, %s219
    %p221 = scmp.eq.s32.totalorder %s27, 0
    %p222 = por %p220, %p221
    %s224 = sadd.s32 %s223, 1
    %p227 = scmp.eq.s32.totalorder %s21, 1
    %p228 = scmp.ne.s32.totalorder %s223, %s225
    %p229 = scmp.eq.s32.totalorder %s21, 0
    %p230 = por %p228, %p229
    %p231 = scmp.ne.s32.totalorder %s223, %s225
    %p232 = scmp.eq.s32.totalorder %s26, 1
    %p233 = por %p231, %p232
    %p234 = scmp.ne.s32.totalorder %s225, %s226
    %p235 = scmp.eq.s32.totalorder %s26, 0
    %p236 = por %p234, %p235
    %p237 = scmp.ne.s32.totalorder %s225, %s226
    %p238 = scmp.eq.s32.totalorder %s27, 1
    %p239 = por %p237, %p238
    %p241 = scmp.ne.s32.totalorder %s226, %s240
    %p242 = scmp.eq.s32.totalorder %s27, 0
    %p243 = por %p241, %p242
    %s245 = sadd.s32 %s244, 1
    %p248 = scmp.eq.s32.totalorder %s21, 1
    %p249 = scmp.ne.s32.totalorder %s244, %s246
    %p250 = scmp.eq.s32.totalorder %s21, 0
    %p251 = por %p249, %p250
    %p252 = scmp.ne.s32.totalorder %s244, %s246
    %p253 = scmp.eq.s32.totalorder %s26, 1
    %p254 = por %p252, %p253
    %p255 = scmp.ne.s32.totalorder %s246, %s247
    %p256 = scmp.eq.s32.totalorder %s26, 0
    %p257 = por %p255, %p256
    %p258 = scmp.ne.s32.totalorder %s246, %s247
    %p259 = scmp.eq.s32.totalorder %s27, 1
    %p260 = por %p258, %p259
    %p262 = scmp.ne.s32.totalorder %s247, %s261
    %p263 = scmp.eq.s32.totalorder %s27, 0
    %p264 = por %p262, %p263
    %s266 = sadd.s32 %s265, 1
    %p269 = scmp.eq.s32.totalorder %s21, 1
    %p270 = scmp.ne.s32.totalorder %s265, %s267
    %p271 = scmp.eq.s32.totalorder %s21, 0
    %p272 = por %p270, %p271
    %p273 = scmp.ne.s32.totalorder %s265, %s267
    %p274 = scmp.eq.s32.totalorder %s26, 1
    %p275 = por %p273, %p274
    %p276 = scmp.ne.s32.totalorder %s267, %s268
    %p277 = scmp.eq.s32.totalorder %s26, 0
    %p278 = por %p276, %p277
    %p279 = scmp.ne.s32.totalorder %s267, %s268
    %p280 = scmp.eq.s32.totalorder %s27, 1
    %p281 = por %p279, %p280
    %p283 = scmp.ne.s32.totalorder %s268, %s282
    %p284 = scmp.eq.s32.totalorder %s27, 0
    %p285 = por %p283, %p284
    %s287 = sadd.s32 %s286, 1
    %p290 = scmp.eq.s32.totalorder %s21, 1
    %p291 = scmp.ne.s32.totalorder %s286, %s288
    %p292 = scmp.eq.s32.totalorder %s21, 0
    %p293 = por %p291, %p292
    %p294 = scmp.ne.s32.totalorder %s286, %s288
    %p295 = scmp.eq.s32.totalorder %s26, 1
    %p296 = por %p294, %p295
    %p297 = scmp.ne.s32.totalorder %s288, %s289
    %p298 = scmp.eq.s32.totalorder %s26, 0
    %p299 = por %p297, %p298
    %p300 = scmp.ne.s32.totalorder %s288, %s289
    %p301 = scmp.eq.s32.totalorder %s27, 1
    %p302 = por %p300, %p301
    %p304 = scmp.ne.s32.totalorder %s289, %s303
    %p305 = scmp.eq.s32.totalorder %s27, 0
    %p306 = por %p304, %p305
    %s308 = sadd.s32 %s307, 1
    %p311 = scmp.eq.s32.totalorder %s21, 1
    %p312 = scmp.ne.s32.totalorder %s307, %s309
    %p313 = scmp.eq.s32.totalorder %s21, 0
    %p314 = por %p312, %p313
    %p315 = scmp.ne.s32.totalorder %s307, %s309
    %p316 = scmp.eq.s32.totalorder %s26, 1
    %p317 = por %p315, %p316
    %p318 = scmp.ne.s32.totalorder %s309, %s310
    %p319 = scmp.eq.s32.totalorder %s26, 0
    %p320 = por %p318, %p319
    %p321 = scmp.ne.s32.totalorder %s309, %s310
    %p322 = scmp.eq.s32.totalorder %s27, 1
    %p323 = por %p321, %p322
    %p325 = scmp.ne.s32.totalorder %s310, %s324
    %p326 = scmp.eq.s32.totalorder %s27, 0
    %p327 = por %p325, %p326
    %s329 = sadd.s32 %s328, 1
    %p332 = scmp.eq.s32.totalorder %s21, 1
    %p333 = scmp.ne.s32.totalorder %s328, %s330
    %p334 = scmp.eq.s32.totalorder %s21, 0
    %p335 = por %p333, %p334
    %p336 = scmp.ne.s32.totalorder %s328, %s330
    %p337 = scmp.eq.s32.totalorder %s26, 1
    %p338 = por %p336, %p337
    %p339 = scmp.ne.s32.totalorder %s330, %s331
    %p340 = scmp.eq.s32.totalorder %s26, 0
    %p341 = por %p339, %p340
    %p342 = scmp.ne.s32.totalorder %s330, %s331
    %p343 = scmp.eq.s32.totalorder %s27, 1
    %p344 = por %p342, %p343
    %p346 = scmp.ne.s32.totalorder %s331, %s345
    %p347 = scmp.eq.s32.totalorder %s27, 0
    %p348 = por %p346, %p347
    %s349 = ssub.s32 %s21, %s28
    %p350 = scmp.eq.s32.totalorder %s349, 0
    %s352 = sadd.s32 %s351, 1
    %s353 = scalar_select %p350, %s351, %s352
    %p356 = pneg %p350
    %p357 = scmp.eq.s32.totalorder %s21, 1
    %p358 = por %p356, %p357
    %p359 = scmp.ne.s32.totalorder %s351, %s354
    %p360 = scmp.eq.s32.totalorder %s21, 0
    %p361 = por %p359, %p360
    %p362 = scmp.ne.s32.totalorder %s351, %s354
    %p363 = scmp.eq.s32.totalorder %s26, 1
    %p364 = por %p362, %p363
    %p365 = scmp.ne.s32.totalorder %s354, %s355
    %p366 = scmp.eq.s32.totalorder %s26, 0
    %p367 = por %p365, %p366
    %p368 = scmp.ne.s32.totalorder %s354, %s355
    %p369 = scmp.eq.s32.totalorder %s27, 1
    %p370 = por %p368, %p369
    %p372 = scmp.ne.s32.totalorder %s355, %s371
    %p373 = scmp.eq.s32.totalorder %s27, 0
    %p374 = por %p372, %p373
    %p375 = scmp.le.s32.totalorder 1, %s21
    %p376 = scmp.lt.s32.totalorder %s21, 3
    %p377 = pnand %p375, %p376
    %p378 = pneg %p377
    // Predicated region
    $region9: #{wrap_xlnet_forward.2} parent=5 // pred_check
      _
    $region10: #{wrap_xlnet_forward.2} parent=5 // pred_check_branch
      %380 = sbr.rel (%p377) target = $region12
    $region11: #{wrap_xlnet_forward.2} parent=5 // pred_region
      %s381 = ssub.s32 %s21, 1
      // Predicated region
      $region13: #{wrap_xlnet_forward.2} parent=11 // pred_check
        %p382 = pneg %p68
      $region14: #{wrap_xlnet_forward.2} parent=11 // pred_check_branch
        %384 = sbr.rel (%p382) target = $region16
      $region15: #{wrap_xlnet_forward.2} parent=11 // pred_region
        _
      $region16: #{wrap_xlnet_forward.2} parent=11 // pred_fallthru
        _
      // Predicated region
      $region17: #{wrap_xlnet_forward.2} parent=11 // pred_check
        %p385 = pneg %p89
      $region18: #{wrap_xlnet_forward.2} parent=11 // pred_check_branch
        %387 = sbr.rel (%p385) target = $region20
      $region19: #{wrap_xlnet_forward.2} parent=11 // pred_region
        _
      $region20: #{wrap_xlnet_forward.2} parent=11 // pred_fallthru
        _
      // Predicated region
      $region21: #{wrap_xlnet_forward.2} parent=11 // pred_check
        %p388 = pneg %p110
      $region22: #{wrap_xlnet_forward.2} parent=11 // pred_check_branch
        %390 = sbr.rel (%p388) target = $region24
      $region23: #{wrap_xlnet_forward.2} parent=11 // pred_region
        _
      $region24: #{wrap_xlnet_forward.2} parent=11 // pred_fallthru
        _
      // Predicated region
      $region25: #{wrap_xlnet_forward.2} parent=11 // pred_check
        %p391 = pneg %p131
      $region26: #{wrap_xlnet_forward.2} parent=11 // pred_check_branch
        %393 = sbr.rel (%p391) target = $region28
      $region27: #{wrap_xlnet_forward.2} parent=11 // pred_region
        _
      $region28: #{wrap_xlnet_forward.2} parent=11 // pred_fallthru
        _
      // Predicated region
      $region29: #{wrap_xlnet_forward.2} parent=11 // pred_check
        %p394 = pneg %p152
      $region30: #{wrap_xlnet_forward.2} parent=11 // pred_check_branch
        %396 = sbr.rel (%p394) target = $region32
      $region31: #{wrap_xlnet_forward.2} parent=11 // pred_region
        _
      $region32: #{wrap_xlnet_forward.2} parent=11 // pred_fallthru
        _
      // Predicated region
      $region33: #{wrap_xlnet_forward.2} parent=11 // pred_check
        %p397 = pneg %p173
      $region34: #{wrap_xlnet_forward.2} parent=11 // pred_check_branch
        %399 = sbr.rel (%p397) target = $region36
      $region35: #{wrap_xlnet_forward.2} parent=11 // pred_region
        _
      $region36: #{wrap_xlnet_forward.2} parent=11 // pred_fallthru
        _
      // Predicated region
      $region37: #{wrap_xlnet_forward.2} parent=11 // pred_check
        %p400 = pneg %p194
      $region38: #{wrap_xlnet_forward.2} parent=11 // pred_check_branch
        %402 = sbr.rel (%p400) target = $region40
      $region39: #{wrap_xlnet_forward.2} parent=11 // pred_region
        _
      $region40: #{wrap_xlnet_forward.2} parent=11 // pred_fallthru
        _
      // Predicated region
      $region41: #{wrap_xlnet_forward.2} parent=11 // pred_check
        %p403 = pneg %p215
      $region42: #{wrap_xlnet_forward.2} parent=11 // pred_check_branch
        %405 = sbr.rel (%p403) target = $region44
      $region43: #{wrap_xlnet_forward.2} parent=11 // pred_region
        _
      $region44: #{wrap_xlnet_forward.2} parent=11 // pred_fallthru
        _
      // Predicated region
      $region45: #{wrap_xlnet_forward.2} parent=11 // pred_check
        %p406 = pneg %p236
      $region46: #{wrap_xlnet_forward.2} parent=11 // pred_check_branch
        %408 = sbr.rel (%p406) target = $region48
      $region47: #{wrap_xlnet_forward.2} parent=11 // pred_region
        _
      $region48: #{wrap_xlnet_forward.2} parent=11 // pred_fallthru
        _
      // Predicated region
      $region49: #{wrap_xlnet_forward.2} parent=11 // pred_check
        %p409 = pneg %p257
      $region50: #{wrap_xlnet_forward.2} parent=11 // pred_check_branch
        %411 = sbr.rel (%p409) target = $region52
      $region51: #{wrap_xlnet_forward.2} parent=11 // pred_region
        _
      $region52: #{wrap_xlnet_forward.2} parent=11 // pred_fallthru
        _
      // Predicated region
      $region53: #{wrap_xlnet_forward.2} parent=11 // pred_check
        %p412 = pneg %p278
      $region54: #{wrap_xlnet_forward.2} parent=11 // pred_check_branch
        %414 = sbr.rel (%p412) target = $region56
      $region55: #{wrap_xlnet_forward.2} parent=11 // pred_region
        _
      $region56: #{wrap_xlnet_forward.2} parent=11 // pred_fallthru
        _
      // Predicated region
      $region57: #{wrap_xlnet_forward.2} parent=11 // pred_check
        %p415 = pneg %p299
      $region58: #{wrap_xlnet_forward.2} parent=11 // pred_check_branch
        %417 = sbr.rel (%p415) target = $region60
      $region59: #{wrap_xlnet_forward.2} parent=11 // pred_region
        _
      $region60: #{wrap_xlnet_forward.2} parent=11 // pred_fallthru
        _
      // Predicated region
      $region61: #{wrap_xlnet_forward.2} parent=11 // pred_check
        %p418 = pneg %p320
      $region62: #{wrap_xlnet_forward.2} parent=11 // pred_check_branch
        %420 = sbr.rel (%p418) target = $region64
      $region63: #{wrap_xlnet_forward.2} parent=11 // pred_region
        _
      $region64: #{wrap_xlnet_forward.2} parent=11 // pred_fallthru
        _
      // Predicated region
      $region65: #{wrap_xlnet_forward.2} parent=11 // pred_check
        %p421 = pneg %p341
      $region66: #{wrap_xlnet_forward.2} parent=11 // pred_check_branch
        %423 = sbr.rel (%p421) target = $region68
      $region67: #{wrap_xlnet_forward.2} parent=11 // pred_region
        _
      $region68: #{wrap_xlnet_forward.2} parent=11 // pred_fallthru
        _
    $region12: #{wrap_xlnet_forward.2} parent=5 // pred_fallthru
      _
    %p424 = scmp.lt.s32.totalorder %s21, 2
    // Predicated region
    $region69: #{wrap_xlnet_forward.2} parent=5 // pred_check
      %p425 = pneg %p424
    $region70: #{wrap_xlnet_forward.2} parent=5 // pred_check_branch
      %427 = sbr.rel (%p425) target = $region72
    $region71: #{wrap_xlnet_forward.2} parent=5 // pred_region
      // Predicated region
      $region73: #{wrap_xlnet_forward.2} parent=71 // pred_check
        %p428 = pneg %p41
      $region74: #{wrap_xlnet_forward.2} parent=71 // pred_check_branch
        %430 = sbr.rel (%p428) target = $region76
      $region75: #{wrap_xlnet_forward.2} parent=71 // pred_region
        %p431 = scmp.lt.s32.totalorder %s21, 1
        %s432 = scalar_select %p431, %s21, 1
        %s433 = smul.addr %s432, 8
        %s434 = scalar_lea.vmem %s0, %s433
      $region76: #{wrap_xlnet_forward.2} parent=71 // pred_fallthru
        _
    $region72: #{wrap_xlnet_forward.2} parent=5 // pred_fallthru
      _
    %p435 = scmp.le.s32.totalorder 1, %s21
    %p436 = scmp.lt.s32.totalorder %s21, 3
    %p437 = pnand %p435, %p436
    %p438 = pneg %p437
    // Predicated region
    $region77: #{wrap_xlnet_forward.2} parent=5 // pred_check
      _
    $region78: #{wrap_xlnet_forward.2} parent=5 // pred_check_branch
      %440 = sbr.rel (%p437) target = $region80
    $region79: #{wrap_xlnet_forward.2} parent=5 // pred_region
      %s441 = ssub.s32 %s21, 1
      %p442 = scmp.lt.s32.totalorder %s26, 1
      %s443 = scalar_select %p442, %s26, 1
      %s444 = smul.addr %s443, 8
      %s445 = scalar_lea.vmem %s0, %s444
      %p446 = pneg %p47
      %p447 = pneg %p44
      %p448 = pneg %p68
      %p449 = pneg %p65
      %p450 = pneg %p89
      %p451 = pneg %p86
      %p452 = pneg %p110
      %p453 = pneg %p107
      %p454 = pneg %p131
      %p455 = pneg %p128
      %p456 = pneg %p152
      %p457 = pneg %p149
      %p458 = pneg %p173
      %p459 = pneg %p170
      %p460 = pneg %p194
      %p461 = pneg %p191
      %p462 = pneg %p215
      %p463 = pneg %p212
      %p464 = pneg %p236
      %p465 = pneg %p233
      %p466 = pneg %p257
      %p467 = pneg %p254
      %p468 = pneg %p278
      %p469 = pneg %p275
      %p470 = pneg %p299
      %p471 = pneg %p296
      %p472 = pneg %p320
      %p473 = pneg %p317
      %p474 = pneg %p341
      %p475 = pneg %p338
      %p476 = pneg %p367
      %p477 = pneg %p364
      %p478 = scmp.lt.s32.totalorder %s26, 1
      %s479 = scalar_select %p478, %s26, 1
      %s480 = smul.addr %s479, 8
      %s481 = scalar_lea.vmem %s15, %s480
      %p482 = scmp.lt.s32.totalorder %s26, 1
      %s483 = scalar_select %p482, %s26, 1
      %s484 = smul.addr %s483, 8
      %s485 = scalar_lea.vmem %s0, %s484
      %p486 = scmp.lt.s32.totalorder %s26, 1
      %s487 = scalar_select %p486, %s26, 1
      %s488 = smul.addr %s487, 8
      %s489 = scalar_lea.vmem %s15, %s488
      %v491 = vld [vmem:[%s485] sm:$0xff]
      %v492 = vpack.c.bf16 %v491, %v491
      %v493 = vld [vmem:[%s2] sm:$0xff]
      %v494 = vld [vmem:[%s2 + $0x8] sm:$0xff]
      %v495 = vld [vmem:[%s2 + $0x10] sm:$0xff]
      %v496 = vld [vmem:[%s2 + $0x18] sm:$0xff]
      %v497 = vpack.c.bf16 %v494, %v493
      %v498 = vpack.c.bf16 %v496, %v495
      %vm499 = vcmask 261120
      %v501 = vsel %vm499, %v492, 0
      %503 = vmatprep.subr.bf16.mxu0 0
      %504 = vmatpush1.bf16.msra.mxu0 %v497
      %505 = vmatprep.subr.bf16.mxu0 0
      %506 = vmatpush1.bf16.msra.mxu0 %v498
      %507 = vmatprep.subr.bf16.mxu0 0
      %508 = vmatpush1.bf16.msra.mxu0 0
      %509 = vmatprep.subr.bf16.mxu0 0
      %510 = vmatpush1.bf16.msra.mxu0 0
      %511 = vmatprep.subr.bf16.mxu0 0
      %512 = vmatpush1.bf16.msra.mxu0 0
      %513 = vmatprep.subr.bf16.mxu0 0
      %514 = vmatpush1.bf16.msra.mxu0 0
      %515 = vmatprep.subr.bf16.mxu0 0
      %516 = vmatpush1.bf16.msra.mxu0 0
      %517 = vmatprep.subr.bf16.mxu0 0
      %518 = vmatpush1.bf16.msra.mxu0 0
      %519 = vmatprep.subr.bf16.mxu0 0
      %520 = vmatpush1.bf16.msra.mxu0 0
      %521 = vmatprep.subr.bf16.mxu0 0
      %522 = vmatpush1.bf16.msra.mxu0 0
      %523 = vmatprep.subr.bf16.mxu0 0
      %524 = vmatpush1.bf16.msra.mxu0 0
      %525 = vmatprep.subr.bf16.mxu0 0
      %526 = vmatpush1.bf16.msra.mxu0 0
      %527 = vmatprep.subr.bf16.mxu0 0
      %528 = vmatpush1.bf16.msra.mxu0 0
      %529 = vmatprep.subr.bf16.mxu0 0
      %530 = vmatpush1.bf16.msra.mxu0 0
      %531 = vmatprep.subr.bf16.mxu0 0
      %532 = vmatpush1.bf16.msra.mxu0 0
      %533 = vmatprep.subr.bf16.mxu0 0
      %534 = vmatpush1.bf16.msra.mxu0 0
      %535 = vmatprep.mubr.bf16.mxu0 0
      %536 = vmatmul.mubr.bf16.gmra.mrb[0].mxu0 %v501
      %v537 = vpop.f32.mrb[0].mxu0
      %v538 = vadd.f32 0.0, %v537
      %v539 = vpop.f32.mrb[0].mxu0
      %v540 = vpop.f32.mrb[0].mxu0
      %v541 = vpop.f32.mrb[0].mxu0
      %542 = vdwg.mxu0
      %v543 = vld [vmem:[%s1] sm:$0xff]
      %v544 = vld [vmem:[%s1 + $0x8] sm:$0xff]
      %v545 = vpack.c.bf16 %v544, %v543
      %v546 = vld [vmem:[%s3] sm:$0xff]
      %v547 = vld [vmem:[%s3 + $0x8] sm:$0xff]
      %v548 = vld [vmem:[%s3 + $0x10] sm:$0xff]
      %v549 = vld [vmem:[%s3 + $0x18] sm:$0xff]
      %v550 = vpack.c.bf16 %v547, %v546
      %v551 = vpack.c.bf16 %v549, %v548
      %v553 = vsel %vm499, %v545, 0
      %555 = vmatprep.subr.bf16.mxu0 0
      %556 = vmatpush1.bf16.msra.mxu0 %v550
      %557 = vmatprep.subr.bf16.mxu0 0
      %558 = vmatpush1.bf16.msra.mxu0 %v551
      %559 = vmatprep.subr.bf16.mxu0 0
      %560 = vmatpush1.bf16.msra.mxu0 0
      %561 = vmatprep.subr.bf16.mxu0 0
      %562 = vmatpush1.bf16.msra.mxu0 0
      %563 = vmatprep.subr.bf16.mxu0 0
      %564 = vmatpush1.bf16.msra.mxu0 0
      %565 = vmatprep.subr.bf16.mxu0 0
      %566 = vmatpush1.bf16.msra.mxu0 0
      %567 = vmatprep.subr.bf16.mxu0 0
      %568 = vmatpush1.bf16.msra.mxu0 0
      %569 = vmatprep.subr.bf16.mxu0 0
      %570 = vmatpush1.bf16.msra.mxu0 0
      %571 = vmatprep.subr.bf16.mxu0 0
      %572 = vmatpush1.bf16.msra.mxu0 0
      %573 = vmatprep.subr.bf16.mxu0 0
      %574 = vmatpush1.bf16.msra.mxu0 0
      %575 = vmatprep.subr.bf16.mxu0 0
      %576 = vmatpush1.bf16.msra.mxu0 0
      %577 = vmatprep.subr.bf16.mxu0 0
      %578 = vmatpush1.bf16.msra.mxu0 0
      %579 = vmatprep.subr.bf16.mxu0 0
      %580 = vmatpush1.bf16.msra.mxu0 0
      %581 = vmatprep.subr.bf16.mxu0 0
      %582 = vmatpush1.bf16.msra.mxu0 0
      %583 = vmatprep.subr.bf16.mxu0 0
      %584 = vmatpush1.bf16.msra.mxu0 0
      %585 = vmatprep.subr.bf16.mxu0 0
      %586 = vmatpush1.bf16.msra.mxu0 0
      %587 = vmatprep.mubr.bf16.mxu0 0
      %588 = vmatmul.mubr.bf16.gmra.mrb[0].mxu0 %v553
      %v589 = vpop.f32.mrb[0].mxu0
      %v590 = vadd.f32 0.0, %v589
      %v591 = vpop.f32.mrb[0].mxu0
      %v592 = vpop.f32.mrb[0].mxu0
      %v593 = vadd.f32 0.0, %v592
      %v594 = vpop.f32.mrb[0].mxu0
      %595 = vdwg.mxu0
      %v596 = vld [vmem:[%s4] sm:$0x1]
      %v598 = vlaneseq
      %v599 = vshrl.u32 %v598, 7
      %v600 = vsub.s32 0, %v599
      %v601 = vrot.slane %v596, %v600
      %v603 = vadd.f32 %v538, %v601
      %v604 = vld [vmem:[%s5] sm:$0x1]
      %v606 = vlaneseq
      %v607 = vshrl.u32 %v606, 7
      %v608 = vsub.s32 0, %v607
      %v609 = vrot.slane %v604, %v608
      %v611 = vadd.f32 %v538, %v609
      %v612 = vld [vmem:[%s6] sm:$0xff]
      %v613 = vld [vmem:[%s6 + $0x8] sm:$0xff]
      %v614 = vld [vmem:[%s6 + $0x10] sm:$0xff]
      %v615 = vld [vmem:[%s6 + $0x18] sm:$0xff]
      %v616 = vlaneseq
      %v617 = vshrl.u32 %v616, 7
      %v618 = vpack.c.bf16 %v603, %v603
      %v619 = vpack.c.bf16 %v538, %v538
      %v620 = vpack.c.bf16 %v611, %v611
      %v621 = vpack.c.bf16 %v593, %v590
      %vm622 = vcmask 130048
      %v624 = vsel %vm622, %v620, 0
      %v627 = vsel %vm622, %v621, 0
      %629 = vmatprep.subr.bf16.mxu0 0
      %630 = vmatpush1.bf16.xpose.msra.mxu0 %v627
      %631 = vmatprep.subr.bf16.mxu0 0
      %632 = vmatpush1.bf16.xpose.msra.mxu0 0
      %633 = vmatprep.subr.bf16.mxu0 0
      %634 = vmatpush1.bf16.xpose.msra.mxu0 0
      %635 = vmatprep.subr.bf16.mxu0 0
      %636 = vmatpush1.bf16.xpose.msra.mxu0 0
      %637 = vmatprep.subr.bf16.mxu0 0
      %638 = vmatpush1.bf16.xpose.msra.mxu0 0
      %639 = vmatprep.subr.bf16.mxu0 0
      %640 = vmatpush1.bf16.xpose.msra.mxu0 0
      %641 = vmatprep.subr.bf16.mxu0 0
      %642 = vmatpush1.bf16.xpose.msra.mxu0 0
      %643 = vmatprep.subr.bf16.mxu0 0
      %644 = vmatpush1.bf16.xpose.msra.mxu0 0
      %645 = vmatprep.subr.bf16.mxu0 0
      %646 = vmatpush1.bf16.xpose.msra.mxu0 0
      %647 = vmatprep.subr.bf16.mxu0 0
      %648 = vmatpush1.bf16.xpose.msra.mxu0 0
      %649 = vmatprep.subr.bf16.mxu0 0
      %650 = vmatpush1.bf16.xpose.msra.mxu0 0
      %651 = vmatprep.subr.bf16.mxu0 0
      %652 = vmatpush1.bf16.xpose.msra.mxu0 0
      %653 = vmatprep.subr.bf16.mxu0 0
      %654 = vmatpush1.bf16.xpose.msra.mxu0 0
      %655 = vmatprep.subr.bf16.mxu0 0
      %656 = vmatpush1.bf16.xpose.msra.mxu0 0
      %657 = vmatprep.subr.bf16.mxu0 0
      %658 = vmatpush1.bf16.xpose.msra.mxu0 0
      %659 = vmatprep.subr.bf16.mxu0 0
      %660 = vmatpush1.bf16.xpose.msra.mxu0 0
      %661 = vmatprep.mubr.bf16.mxu0 0
      %662 = vmatmul.mubr.bf16.gmra.mrb[0].mxu0 %v624
      %v663 = vpop.f32.mrb[0].mxu0
      %v664 = vadd.f32 0.0, %v663
      %v665 = vpop.f32.mrb[0].mxu0
      %v666 = vpop.f32.mrb[0].mxu0
      %v667 = vpop.f32.mrb[0].mxu0
      %668 = vdwg.mxu0
      %vm669 = vcmp.eq.s32.totalorder %v617, 0
      %v670 = vsel %vm669, %v664, 0.0
      %v671 = vadd.f32 %v670, 0.0
      %vm672 = vcmp.eq.s32.totalorder %v617, 1
      %v673 = vsel %vm672, %v664, 0.0
      %675 = vrot.lane.b32.xlu0 %v673, 1
      %v676 = vpop.permute.xlu0 %675
      %v678 = vadd.f32 %v671, %v676
      %vm679 = vcmp.eq.s32.totalorder %v617, 2
      %v680 = vsel %vm679, %v664, 0.0
      %682 = vrot.lane.b32.xlu0 %v680, 2
      %v683 = vpop.permute.xlu0 %682
      %v685 = vadd.f32 %v678, %v683
      %vm686 = vcmp.eq.s32.totalorder %v617, 3
      %v687 = vsel %vm686, %v664, 0.0
      %689 = vrot.lane.b32.xlu0 %v687, 3
      %v690 = vpop.permute.xlu0 %689
      %v692 = vadd.f32 %v685, %v690
      %vm693 = vcmp.eq.s32.totalorder %v617, 4
      %v694 = vsel %vm693, %v664, 0.0
      %696 = vrot.lane.b32.xlu0 %v694, 4
      %v697 = vpop.permute.xlu0 %696
      %v699 = vadd.f32 %v692, %v697
      %vm700 = vcmp.eq.s32.totalorder %v617, 5
      %v701 = vsel %vm700, %v664, 0.0
      %703 = vrot.lane.b32.xlu0 %v701, 5
      %v704 = vpop.permute.xlu0 %703
      %v706 = vadd.f32 %v699, %v704
      %vm707 = vcmp.eq.s32.totalorder %v617, 6
      %v708 = vsel %vm707, %v664, 0.0
      %710 = vrot.lane.b32.xlu0 %v708, 6
      %v711 = vpop.permute.xlu0 %710
      %v713 = vadd.f32 %v706, %v711
      %vm714 = vcmp.eq.s32.totalorder %v617, 7
      %v715 = vsel %vm714, %v664, 0.0
      %717 = vrot.lane.b32.xlu0 %v715, 7
      %v718 = vpop.permute.xlu0 %717
      %v720 = vadd.f32 %v713, %v718
      %722 = vrot.lane.b32.xlu0 %v619, 96
      %v723 = vpop.permute.xlu0 %722
      %725 = vrot.lane.b32.xlu0 %v720, 120
      %v726 = vpop.permute.xlu0 %725
      %v729 = vsel %vm622, %v618, 0
      %v732 = vsel %vm622, %v723, 0
      %734 = vmatprep.subr.bf16.mxu0 0
      %735 = vmatpush1.bf16.xpose.msra.mxu0 %v732
      %736 = vmatprep.subr.bf16.mxu0 0
      %737 = vmatpush1.bf16.xpose.msra.mxu0 0
      %738 = vmatprep.subr.bf16.mxu0 0
      %739 = vmatpush1.bf16.xpose.msra.mxu0 0
      %740 = vmatprep.subr.bf16.mxu0 0
      %741 = vmatpush1.bf16.xpose.msra.mxu0 0
      %742 = vmatprep.subr.bf16.mxu0 0
      %743 = vmatpush1.bf16.xpose.msra.mxu0 0
      %744 = vmatprep.subr.bf16.mxu0 0
      %745 = vmatpush1.bf16.xpose.msra.mxu0 0
      %746 = vmatprep.subr.bf16.mxu0 0
      %747 = vmatpush1.bf16.xpose.msra.mxu0 0
      %748 = vmatprep.subr.bf16.mxu0 0
      %749 = vmatpush1.bf16.xpose.msra.mxu0 0
      %750 = vmatprep.subr.bf16.mxu0 0
      %751 = vmatpush1.bf16.xpose.msra.mxu0 0
      %752 = vmatprep.subr.bf16.mxu0 0
      %753 = vmatpush1.bf16.xpose.msra.mxu0 0
      %754 = vmatprep.subr.bf16.mxu0 0
      %755 = vmatpush1.bf16.xpose.msra.mxu0 0
      %756 = vmatprep.subr.bf16.mxu0 0
      %757 = vmatpush1.bf16.xpose.msra.mxu0 0
      %758 = vmatprep.subr.bf16.mxu0 0
      %759 = vmatpush1.bf16.xpose.msra.mxu0 0
      %760 = vmatprep.subr.bf16.mxu0 0
      %761 = vmatpush1.bf16.xpose.msra.mxu0 0
      %762 = vmatprep.subr.bf16.mxu0 0
      %763 = vmatpush1.bf16.xpose.msra.mxu0 0
      %764 = vmatprep.subr.bf16.mxu0 0
      %765 = vmatpush1.bf16.xpose.msra.mxu0 0
      %766 = vmatprep.mubr.bf16.mxu0 0
      %767 = vmatmul.mubr.bf16.gmra.mrb[0].mxu0 %v729
      %v768 = vpop.f32.mrb[0].mxu0
      %v769 = vadd.f32 %v726, %v768
      %v770 = vpop.f32.mrb[0].mxu0
      %v771 = vpop.f32.mrb[0].mxu0
      %v772 = vpop.f32.mrb[0].mxu0
      %773 = vdwg.mxu0
      %v774 = vmul.f32 %v769, 0.25
      %vm775 = vcmask 64512
      %v776 = vsel %vm775, %v774, -inf
      %777 = vmax.xlane.f32.xlu0 %v776
      %v778 = vpop.xlane.xlu0 %777
      %v779 = vsub.f32 %v774, %v778
      %v780 = vmul.f32 %v779, 1.442695
      %v781 = vpow.pop %v780
      %v782 = vsel %vm775, %v781, 0.0
      %783 = vadd.xlane.f32.xlu0 %v782
      %v784 = vpop.xlane.xlu0 %783
      %v785 = vrcp.pop %v784
      %v786 = vmul.f32 %v781, %v785
      %v787 = vpack.c.bf16 %v786, %v786
      %788 = vrot.lane.b32.xlu0 %v619, 64
      %v789 = vpop.permute.xlu0 %788
      %v791 = vsel %vm775, %v787, 0
      %vm793 = vcmask 1043456
      %v795 = vsel %vm793, %v789, 0
      %797 = vmatprep.subr.bf16.mxu0 0
      %798 = vmatpush1.bf16.msra.mxu0 %v795
      %799 = vmatprep.subr.bf16.mxu0 0
      %800 = vmatpush1.bf16.msra.mxu0 0
      %801 = vmatprep.subr.bf16.mxu0 0
      %802 = vmatpush1.bf16.msra.mxu0 0
      %803 = vmatprep.subr.bf16.mxu0 0
      %804 = vmatpush1.bf16.msra.mxu0 0
      %805 = vmatprep.subr.bf16.mxu0 0
      %806 = vmatpush1.bf16.msra.mxu0 0
      %807 = vmatprep.subr.bf16.mxu0 0
      %808 = vmatpush1.bf16.msra.mxu0 0
      %809 = vmatprep.subr.bf16.mxu0 0
      %810 = vmatpush1.bf16.msra.mxu0 0
      %811 = vmatprep.subr.bf16.mxu0 0
      %812 = vmatpush1.bf16.msra.mxu0 0
      %813 = vmatprep.subr.bf16.mxu0 0
      %814 = vmatpush1.bf16.msra.mxu0 0
      %815 = vmatprep.subr.bf16.mxu0 0
      %816 = vmatpush1.bf16.msra.mxu0 0
      %817 = vmatprep.subr.bf16.mxu0 0
      %818 = vmatpush1.bf16.msra.mxu0 0
      %819 = vmatprep.subr.bf16.mxu0 0
      %820 = vmatpush1.bf16.msra.mxu0 0
      %821 = vmatprep.subr.bf16.mxu0 0
      %822 = vmatpush1.bf16.msra.mxu0 0
      %823 = vmatprep.subr.bf16.mxu0 0
      %824 = vmatpush1.bf16.msra.mxu0 0
      %825 = vmatprep.subr.bf16.mxu0 0
      %826 = vmatpush1.bf16.msra.mxu0 0
      %827 = vmatprep.subr.bf16.mxu0 0
      %828 = vmatpush1.bf16.msra.mxu0 0
      %829 = vmatprep.mubr.bf16.mxu0 0
      %830 = vmatmul.mubr.bf16.gmra.mrb[0].mxu0 %v791
      %v831 = vpop.f32.mrb[0].mxu0
      %v832 = vadd.f32 0.0, %v831
      %v833 = vpop.f32.mrb[0].mxu0
      %v834 = vpop.f32.mrb[0].mxu0
      %v835 = vpop.f32.mrb[0].mxu0
      %836 = vdwg.mxu0
      %v837 = vpack.c.bf16 %v832, %v832
      %v838 = vpack.c.bf16 %v613, %v612
      %840 = vrot.lane.b32.xlu0 %v620, 112
      %v841 = vpop.permute.xlu0 %840
      %843 = vrot.lane.b32.xlu0 %v621, 112
      %v844 = vpop.permute.xlu0 %843
      %v846 = vsel %vm622, %v841, 0
      %v849 = vsel %vm622, %v844, 0
      %851 = vmatprep.subr.bf16.mxu0 0
      %852 = vmatpush1.bf16.xpose.msra.mxu0 %v849
      %853 = vmatprep.subr.bf16.mxu0 0
      %854 = vmatpush1.bf16.xpose.msra.mxu0 0
      %855 = vmatprep.subr.bf16.mxu0 0
      %856 = vmatpush1.bf16.xpose.msra.mxu0 0
      %857 = vmatprep.subr.bf16.mxu0 0
      %858 = vmatpush1.bf16.xpose.msra.mxu0 0
      %859 = vmatprep.subr.bf16.mxu0 0
      %860 = vmatpush1.bf16.xpose.msra.mxu0 0
      %861 = vmatprep.subr.bf16.mxu0 0
      %862 = vmatpush1.bf16.xpose.msra.mxu0 0
      %863 = vmatprep.subr.bf16.mxu0 0
      %864 = vmatpush1.bf16.xpose.msra.mxu0 0
      %865 = vmatprep.subr.bf16.mxu0 0
      %866 = vmatpush1.bf16.xpose.msra.mxu0 0
      %867 = vmatprep.subr.bf16.mxu0 0
      %868 = vmatpush1.bf16.xpose.msra.mxu0 0
      %869 = vmatprep.subr.bf16.mxu0 0
      %870 = vmatpush1.bf16.xpose.msra.mxu0 0
      %871 = vmatprep.subr.bf16.mxu0 0
      %872 = vmatpush1.bf16.xpose.msra.mxu0 0
      %873 = vmatprep.subr.bf16.mxu0 0
      %874 = vmatpush1.bf16.xpose.msra.mxu0 0
      %875 = vmatprep.subr.bf16.mxu0 0
      %876 = vmatpush1.bf16.xpose.msra.mxu0 0
      %877 = vmatprep.subr.bf16.mxu0 0
      %878 = vmatpush1.bf16.xpose.msra.mxu0 0
      %879 = vmatprep.subr.bf16.mxu0 0
      %880 = vmatpush1.bf16.xpose.msra.mxu0 0
      %881 = vmatprep.subr.bf16.mxu0 0
      %882 = vmatpush1.bf16.xpose.msra.mxu0 0
      %883 = vmatprep.mubr.bf16.mxu0 0
      %884 = vmatmul.mubr.bf16.gmra.mrb[0].mxu0 %v846
      %v885 = vpop.f32.mrb[0].mxu0
      %v886 = vadd.f32 0.0, %v885
      %v887 = vpop.f32.mrb[0].mxu0
      %v888 = vpop.f32.mrb[0].mxu0
      %v889 = vpop.f32.mrb[0].mxu0
      %890 = vdwg.mxu0
      %v891 = vsel %vm669, %v886, 0.0
      %v892 = vadd.f32 %v891, 0.0
      %v893 = vsel %vm672, %v886, 0.0
      %895 = vrot.lane.b32.xlu0 %v893, 1
      %v896 = vpop.permute.xlu0 %895
      %v898 = vadd.f32 %v892, %v896
      %v899 = vsel %vm679, %v886, 0.0
      %901 = vrot.lane.b32.xlu0 %v899, 2
      %v902 = vpop.permute.xlu0 %901
      %v904 = vadd.f32 %v898, %v902
      %v905 = vsel %vm686, %v886, 0.0
      %907 = vrot.lane.b32.xlu0 %v905, 3
      %v908 = vpop.permute.xlu0 %907
      %v910 = vadd.f32 %v904, %v908
      %v911 = vsel %vm693, %v886, 0.0
      %913 = vrot.lane.b32.xlu0 %v911, 4
      %v914 = vpop.permute.xlu0 %913
      %v916 = vadd.f32 %v910, %v914
      %v917 = vsel %vm700, %v886, 0.0
      %919 = vrot.lane.b32.xlu0 %v917, 5
      %v920 = vpop.permute.xlu0 %919
      %v922 = vadd.f32 %v916, %v920
      %v923 = vsel %vm707, %v886, 0.0
      %925 = vrot.lane.b32.xlu0 %v923, 6
      %v926 = vpop.permute.xlu0 %925
      %v928 = vadd.f32 %v922, %v926
      %v929 = vsel %vm714, %v886, 0.0
      %931 = vrot.lane.b32.xlu0 %v929, 7
      %v932 = vpop.permute.xlu0 %931
      %v934 = vadd.f32 %v928, %v932
      %936 = vrot.lane.b32.xlu0 %v618, 112
      %v937 = vpop.permute.xlu0 %936
      %938 = vrot.lane.b32.xlu0 %v619, 80
      %v939 = vpop.permute.xlu0 %938
      %941 = vrot.lane.b32.xlu0 %v934, 120
      %v942 = vpop.permute.xlu0 %941
      %v945 = vsel %vm622, %v937, 0
      %v948 = vsel %vm622, %v939, 0
      %950 = vmatprep.subr.bf16.mxu0 0
      %951 = vmatpush1.bf16.xpose.msra.mxu0 %v948
      %952 = vmatprep.subr.bf16.mxu0 0
      %953 = vmatpush1.bf16.xpose.msra.mxu0 0
      %954 = vmatprep.subr.bf16.mxu0 0
      %955 = vmatpush1.bf16.xpose.msra.mxu0 0
      %956 = vmatprep.subr.bf16.mxu0 0
      %957 = vmatpush1.bf16.xpose.msra.mxu0 0
      %958 = vmatprep.subr.bf16.mxu0 0
      %959 = vmatpush1.bf16.xpose.msra.mxu0 0
      %960 = vmatprep.subr.bf16.mxu0 0
      %961 = vmatpush1.bf16.xpose.msra.mxu0 0
      %962 = vmatprep.subr.bf16.mxu0 0
      %963 = vmatpush1.bf16.xpose.msra.mxu0 0
      %964 = vmatprep.subr.bf16.mxu0 0
      %965 = vmatpush1.bf16.xpose.msra.mxu0 0
      %966 = vmatprep.subr.bf16.mxu0 0
      %967 = vmatpush1.bf16.xpose.msra.mxu0 0
      %968 = vmatprep.subr.bf16.mxu0 0
      %969 = vmatpush1.bf16.xpose.msra.mxu0 0
      %970 = vmatprep.subr.bf16.mxu0 0
      %971 = vmatpush1.bf16.xpose.msra.mxu0 0
      %972 = vmatprep.subr.bf16.mxu0 0
      %973 = vmatpush1.bf16.xpose.msra.mxu0 0
      %974 = vmatprep.subr.bf16.mxu0 0
      %975 = vmatpush1.bf16.xpose.msra.mxu0 0
      %976 = vmatprep.subr.bf16.mxu0 0
      %977 = vmatpush1.bf16.xpose.msra.mxu0 0
      %978 = vmatprep.subr.bf16.mxu0 0
      %979 = vmatpush1.bf16.xpose.msra.mxu0 0
      %980 = vmatprep.subr.bf16.mxu0 0
      %981 = vmatpush1.bf16.xpose.msra.mxu0 0
      %982 = vmatprep.mubr.bf16.mxu0 0
      %983 = vmatmul.mubr.bf16.gmra.mrb[0].mxu0 %v945
      %v984 = vpop.f32.mrb[0].mxu0
      %v985 = vadd.f32 %v942, %v984
      %v986 = vpop.f32.mrb[0].mxu0
      %v987 = vpop.f32.mrb[0].mxu0
      %v988 = vpop.f32.mrb[0].mxu0
      %989 = vdwg.mxu0
      %v990 = vmul.f32 %v985, 0.25
      %v991 = vsel %vm775, %v990, -inf
      %992 = vmax.xlane.f32.xlu0 %v991
      %v993 = vpop.xlane.xlu0 %992
      %v994 = vsub.f32 %v990, %v993
      %v995 = vmul.f32 %v994, 1.442695
      %v996 = vpow.pop %v995
      %v997 = vsel %vm775, %v996, 0.0
      %998 = vadd.xlane.f32.xlu0 %v997
      %v999 = vpop.xlane.xlu0 %998
      %v1000 = vrcp.pop %v999
      %v1001 = vmul.f32 %v996, %v1000
      %v1002 = vpack.c.bf16 %v1001, %v1001
      %1003 = vrot.lane.b32.xlu0 %v619, 48
      %v1004 = vpop.permute.xlu0 %1003
      %v1006 = vsel %vm775, %v1002, 0
      %v1009 = vsel %vm793, %v1004, 0
      %1011 = vmatprep.subr.bf16.mxu0 0
      %1012 = vmatpush1.bf16.msra.mxu0 %v1009
      %1013 = vmatprep.subr.bf16.mxu0 0
      %1014 = vmatpush1.bf16.msra.mxu0 0
      %1015 = vmatprep.subr.bf16.mxu0 0
      %1016 = vmatpush1.bf16.msra.mxu0 0
      %1017 = vmatprep.subr.bf16.mxu0 0
      %1018 = vmatpush1.bf16.msra.mxu0 0
      %1019 = vmatprep.subr.bf16.mxu0 0
      %1020 = vmatpush1.bf16.msra.mxu0 0
      %1021 = vmatprep.subr.bf16.mxu0 0
      %1022 = vmatpush1.bf16.msra.mxu0 0
      %1023 = vmatprep.subr.bf16.mxu0 0
      %1024 = vmatpush1.bf16.msra.mxu0 0
      %1025 = vmatprep.subr.bf16.mxu0 0
      %1026 = vmatpush1.bf16.msra.mxu0 0
      %1027 = vmatprep.subr.bf16.mxu0 0
      %1028 = vmatpush1.bf16.msra.mxu0 0
      %1029 = vmatprep.subr.bf16.mxu0 0
      %1030 = vmatpush1.bf16.msra.mxu0 0
      %1031 = vmatprep.subr.bf16.mxu0 0
      %1032 = vmatpush1.bf16.msra.mxu0 0
      %1033 = vmatprep.subr.bf16.mxu0 0
      %1034 = vmatpush1.bf16.msra.mxu0 0
      %1035 = vmatprep.subr.bf16.mxu0 0
      %1036 = vmatpush1.bf16.msra.mxu0 0
      %1037 = vmatprep.subr.bf16.mxu0 0
      %1038 = vmatpush1.bf16.msra.mxu0 0
      %1039 = vmatprep.subr.bf16.mxu0 0
      %1040 = vmatpush1.bf16.msra.mxu0 0
      %1041 = vmatprep.subr.bf16.mxu0 0
      %1042 = vmatpush1.bf16.msra.mxu0 0
      %1043 = vmatprep.mubr.bf16.mxu0 0
      %1044 = vmatmul.mubr.bf16.gmra.mrb[0].mxu0 %v1006
      %v1045 = vpop.f32.mrb[0].mxu0
      %v1046 = vadd.f32 0.0, %v1045
      %v1047 = vpop.f32.mrb[0].mxu0
      %v1048 = vpop.f32.mrb[0].mxu0
      %v1049 = vpop.f32.mrb[0].mxu0
      %1050 = vdwg.mxu0
      %v1051 = vpack.c.bf16 %v1046, %v1046
      %v1052 = vpack.c.bf16 %v615, %v614
      %v1054 = vsel %vm622, %v1051, 0
      %1056 = vmatprep.subr.bf16.mxu0 0
      %1057 = vmatpush1.bf16.msra.mxu0 %v1052
      %1058 = vmatprep.subr.bf16.mxu0 0
      %1059 = vmatpush1.bf16.msra.mxu0 0
      %1060 = vmatprep.subr.bf16.mxu0 0
      %1061 = vmatpush1.bf16.msra.mxu0 0
      %1062 = vmatprep.subr.bf16.mxu0 0
      %1063 = vmatpush1.bf16.msra.mxu0 0
      %1064 = vmatprep.subr.bf16.mxu0 0
      %1065 = vmatpush1.bf16.msra.mxu0 0
      %1066 = vmatprep.subr.bf16.mxu0 0
      %1067 = vmatpush1.bf16.msra.mxu0 0
      %1068 = vmatprep.subr.bf16.mxu0 0
      %1069 = vmatpush1.bf16.msra.mxu0 0
      %1070 = vmatprep.subr.bf16.mxu0 0
      %1071 = vmatpush1.bf16.msra.mxu0 0
      %1072 = vmatprep.subr.bf16.mxu0 0
      %1073 = vmatpush1.bf16.msra.mxu0 0
      %1074 = vmatprep.subr.bf16.mxu0 0
      %1075 = vmatpush1.bf16.msra.mxu0 0
      %1076 = vmatprep.subr.bf16.mxu0 0
      %1077 = vmatpush1.bf16.msra.mxu0 0
      %1078 = vmatprep.subr.bf16.mxu0 0
      %1079 = vmatpush1.bf16.msra.mxu0 0
      %1080 = vmatprep.subr.bf16.mxu0 0
      %1081 = vmatpush1.bf16.msra.mxu0 0
      %1082 = vmatprep.subr.bf16.mxu0 0
      %1083 = vmatpush1.bf16.msra.mxu0 0
      %1084 = vmatprep.subr.bf16.mxu0 0
      %1085 = vmatpush1.bf16.msra.mxu0 0
      %1086 = vmatprep.subr.bf16.mxu0 0
      %1087 = vmatpush1.bf16.msra.mxu0 0
      %1088 = vmatprep.mubr.bf16.mxu0 0
      %1089 = vmatmul.mubr.bf16.gmra.mrb[0].mxu0 %v1054
      %v1090 = vpop.f32.mrb[0].mxu0
      %v1091 = vadd.f32 0.0, %v1090
      %v1092 = vpop.f32.mrb[0].mxu0
      %v1093 = vpop.f32.mrb[0].mxu0
      %v1094 = vpop.f32.mrb[0].mxu0
      %1095 = vdwg.mxu0
      %v1097 = vsel %vm622, %v837, 0
      %1099 = vmatprep.subr.bf16.mxu0 0
      %1100 = vmatpush1.bf16.msra.mxu0 %v838
      %1101 = vmatprep.subr.bf16.mxu0 0
      %1102 = vmatpush1.bf16.msra.mxu0 0
      %1103 = vmatprep.subr.bf16.mxu0 0
      %1104 = vmatpush1.bf16.msra.mxu0 0
      %1105 = vmatprep.subr.bf16.mxu0 0
      %1106 = vmatpush1.bf16.msra.mxu0 0
      %1107 = vmatprep.subr.bf16.mxu0 0
      %1108 = vmatpush1.bf16.msra.mxu0 0
      %1109 = vmatprep.subr.bf16.mxu0 0
      %1110 = vmatpush1.bf16.msra.mxu0 0
      %1111 = vmatprep.subr.bf16.mxu0 0
      %1112 = vmatpush1.bf16.msra.mxu0 0
      %1113 = vmatprep.subr.bf16.mxu0 0
      %1114 = vmatpush1.bf16.msra.mxu0 0
      %1115 = vmatprep.subr.bf16.mxu0 0
      %1116 = vmatpush1.bf16.msra.mxu0 0
      %1117 = vmatprep.subr.bf16.mxu0 0
      %1118 = vmatpush1.bf16.msra.mxu0 0
      %1119 = vmatprep.subr.bf16.mxu0 0
      %1120 = vmatpush1.bf16.msra.mxu0 0
      %1121 = vmatprep.subr.bf16.mxu0 0
      %1122 = vmatpush1.bf16.msra.mxu0 0
      %1123 = vmatprep.subr.bf16.mxu0 0
      %1124 = vmatpush1.bf16.msra.mxu0 0
      %1125 = vmatprep.subr.bf16.mxu0 0
      %1126 = vmatpush1.bf16.msra.mxu0 0
      %1127 = vmatprep.subr.bf16.mxu0 0
      %1128 = vmatpush1.bf16.msra.mxu0 0
      %1129 = vmatprep.subr.bf16.mxu0 0
      %1130 = vmatpush1.bf16.msra.mxu0 0
      %1131 = vmatprep.mubr.bf16.mxu0 0
      %1132 = vmatmul.mubr.bf16.gmra.mrb[0].mxu0 %v1097
      %v1133 = vpop.f32.mrb[0].mxu0
      %v1134 = vadd.f32 %v1091, %v1133
      %v1135 = vpop.f32.mrb[0].mxu0
      %v1136 = vpop.f32.mrb[0].mxu0
      %v1137 = vpop.f32.mrb[0].mxu0
      %1138 = vdwg.mxu0
      %v1139 = vadd.f32 %v1134, %v491
      %v1140 = vld [vmem:[%s7] sm:$0x1]
      %v1141 = vld [vmem:[%s8] sm:$0x1]
      %v1142 = vsel %vm499, %v1139, 0.0
      %1143 = vadd.xlane.f32.xlu0 %v1142
      %v1144 = vpop.xlane.xlu0 %1143
      %v1145 = vrcp.pop 32.0
      %v1146 = vmul.f32 %v1144, %v1145
      %v1147 = vsub.f32 %v1139, %v1146
      %v1148 = vmul.f32 %v1147, %v1147
      %v1149 = vsel %vm499, %v1148, 0.0
      %1150 = vadd.xlane.f32.xlu0 %v1149
      %v1151 = vpop.xlane.xlu0 %1150
      %v1152 = vmul.f32 %v1151, %v1145
      %v1153 = vadd.f32 %v1152, 1e-12
      %v1154 = vrsqrt.pop %v1153
      %v1155 = vmul.f32 %v1147, %v1154
      %v1157 = vlaneseq
      %v1158 = vshrl.u32 %v1157, 7
      %v1159 = vsub.s32 0, %v1158
      %v1160 = vrot.slane %v1140, %v1159
      %v1162 = vmul.f32 %v1155, %v1160
      %v1164 = vlaneseq
      %v1165 = vshrl.u32 %v1164, 7
      %v1166 = vsub.s32 0, %v1165
      %v1167 = vrot.slane %v1141, %v1166
      %v1169 = vadd.f32 %v1162, %v1167
      %v1170 = vpack.c.bf16 %v1169, %v1169
      %v1171 = vld [vmem:[%s9] sm:$0xff]
      %v1172 = vld [vmem:[%s9 + $0x8] sm:$0xff]
      %v1173 = vld [vmem:[%s9 + $0x10] sm:$0xff]
      %v1174 = vld [vmem:[%s9 + $0x18] sm:$0xff]
      %v1175 = vpack.c.bf16 %v1172, %v1171
      %v1176 = vpack.c.bf16 %v1174, %v1173
      %v1177 = vld [vmem:[%s10] sm:$0x1]
      %v1179 = vlaneseq
      %v1180 = vshrl.u32 %v1179, 7
      %v1181 = vsub.s32 0, %v1180
      %v1182 = vrot.slane %v1177, %v1181
      %v1185 = vsel %vm499, %v1170, 0
      %1187 = vmatprep.subr.bf16.mxu0 0
      %1188 = vmatpush1.bf16.msra.mxu0 %v1175
      %1189 = vmatprep.subr.bf16.mxu0 0
      %1190 = vmatpush1.bf16.msra.mxu0 %v1176
      %1191 = vmatprep.subr.bf16.mxu0 0
      %1192 = vmatpush1.bf16.msra.mxu0 0
      %1193 = vmatprep.subr.bf16.mxu0 0
      %1194 = vmatpush1.bf16.msra.mxu0 0
      %1195 = vmatprep.subr.bf16.mxu0 0
      %1196 = vmatpush1.bf16.msra.mxu0 0
      %1197 = vmatprep.subr.bf16.mxu0 0
      %1198 = vmatpush1.bf16.msra.mxu0 0
      %1199 = vmatprep.subr.bf16.mxu0 0
      %1200 = vmatpush1.bf16.msra.mxu0 0
      %1201 = vmatprep.subr.bf16.mxu0 0
      %1202 = vmatpush1.bf16.msra.mxu0 0
      %1203 = vmatprep.subr.bf16.mxu0 0
      %1204 = vmatpush1.bf16.msra.mxu0 0
      %1205 = vmatprep.subr.bf16.mxu0 0
      %1206 = vmatpush1.bf16.msra.mxu0 0
      %1207 = vmatprep.subr.bf16.mxu0 0
      %1208 = vmatpush1.bf16.msra.mxu0 0
      %1209 = vmatprep.subr.bf16.mxu0 0
      %1210 = vmatpush1.bf16.msra.mxu0 0
      %1211 = vmatprep.subr.bf16.mxu0 0
      %1212 = vmatpush1.bf16.msra.mxu0 0
      %1213 = vmatprep.subr.bf16.mxu0 0
      %1214 = vmatpush1.bf16.msra.mxu0 0
      %1215 = vmatprep.subr.bf16.mxu0 0
      %1216 = vmatpush1.bf16.msra.mxu0 0
      %1217 = vmatprep.subr.bf16.mxu0 0
      %1218 = vmatpush1.bf16.msra.mxu0 0
      %1219 = vmatprep.mubr.bf16.mxu0 0
      %1220 = vmatmul.mubr.bf16.gmra.mrb[0].mxu0 %v1185
      %v1221 = vpop.f32.mrb[0].mxu0
      %v1222 = vadd.f32 %v1182, %v1221
      %v1223 = vpop.f32.mrb[0].mxu0
      %v1224 = vpop.f32.mrb[0].mxu0
      %v1225 = vpop.f32.mrb[0].mxu0
      %1226 = vdwg.mxu0
      %v1227 = vmul.f32 %v1222, 0.5
      %v1228 = vmul.f32 %v1222, 0.70710677
      %v1229 = vand.u32 2147483647, %v1228
      %v1230 = vmul.f32 %v1229, 0.3275911
      %v1231 = vadd.f32 %v1230, 1.0
      %v1232 = vrcp.pop %v1231
      %v1233 = vmul.f32 1.0, %v1232
      %v1234 = vmul.f32 %v1233, 1.0614054
      %v1235 = vadd.f32 %v1234, -1.4531521
      %v1236 = vmul.f32 %v1235, %v1233
      %v1237 = vadd.f32 %v1236, 1.4214138
      %v1238 = vmul.f32 %v1237, %v1233
      %v1239 = vadd.f32 %v1238, -0.28449672
      %v1240 = vmul.f32 %v1239, %v1233
      %v1241 = vadd.f32 %v1240, 0.2548296
      %v1242 = vmul.f32 %v1241, %v1233
      %v1243 = vsub.f32 0.0, %v1229
      %v1244 = vmul.f32 %v1243, %v1229
      %v1245 = vmul.f32 %v1244, 1.442695
      %v1246 = vpow.pop %v1245
      %v1247 = vmul.f32 %v1242, %v1246
      %v1248 = vsub.f32 1.0, %v1247
      %vm1249 = vcmp.ge.f32.partialorder %v1228, 0.0
      %v1250 = vsub.f32 0.0, %v1248
      %v1251 = vsel %vm1249, %v1248, %v1250
      %v1252 = vadd.f32 %v1251, 1.0
      %v1253 = vmul.f32 %v1227, %v1252
      %v1254 = vpack.c.bf16 %v1253, %v1253
      %v1255 = vld [vmem:[%s11] sm:$0xff]
      %v1256 = vld [vmem:[%s11 + $0x8] sm:$0xff]
      %v1257 = vld [vmem:[%s11 + $0x10] sm:$0xff]
      %v1258 = vld [vmem:[%s11 + $0x18] sm:$0xff]
      %v1259 = vld [vmem:[%s11 + $0x20] sm:$0xff]
      %v1260 = vld [vmem:[%s11 + $0x28] sm:$0xff]
      %v1261 = vld [vmem:[%s11 + $0x30] sm:$0xff]
      %v1262 = vld [vmem:[%s11 + $0x38] sm:$0xff]
      %v1263 = vpack.c.bf16 %v1256, %v1255
      %v1264 = vpack.c.bf16 %v1258, %v1257
      %v1265 = vpack.c.bf16 %v1260, %v1259
      %v1266 = vpack.c.bf16 %v1262, %v1261
      %v1267 = vld [vmem:[%s12] sm:$0x1]
      %v1269 = vlaneseq
      %v1270 = vshrl.u32 %v1269, 7
      %v1271 = vsub.s32 0, %v1270
      %v1272 = vrot.slane %v1267, %v1271
      %vm1274 = vcmask 523264
      %v1276 = vsel %vm1274, %v1254, 0
      %1278 = vmatprep.subr.bf16.mxu0 0
      %1279 = vmatpush1.bf16.msra.mxu0 %v1263
      %1280 = vmatprep.subr.bf16.mxu0 0
      %1281 = vmatpush1.bf16.msra.mxu0 %v1264
      %1282 = vmatprep.subr.bf16.mxu0 0
      %1283 = vmatpush1.bf16.msra.mxu0 %v1265
      %1284 = vmatprep.subr.bf16.mxu0 0
      %1285 = vmatpush1.bf16.msra.mxu0 %v1266
      %1286 = vmatprep.subr.bf16.mxu0 0
      %1287 = vmatpush1.bf16.msra.mxu0 0
      %1288 = vmatprep.subr.bf16.mxu0 0
      %1289 = vmatpush1.bf16.msra.mxu0 0
      %1290 = vmatprep.subr.bf16.mxu0 0
      %1291 = vmatpush1.bf16.msra.mxu0 0
      %1292 = vmatprep.subr.bf16.mxu0 0
      %1293 = vmatpush1.bf16.msra.mxu0 0
      %1294 = vmatprep.subr.bf16.mxu0 0
      %1295 = vmatpush1.bf16.msra.mxu0 0
      %1296 = vmatprep.subr.bf16.mxu0 0
      %1297 = vmatpush1.bf16.msra.mxu0 0
      %1298 = vmatprep.subr.bf16.mxu0 0
      %1299 = vmatpush1.bf16.msra.mxu0 0
      %1300 = vmatprep.subr.bf16.mxu0 0
      %1301 = vmatpush1.bf16.msra.mxu0 0
      %1302 = vmatprep.subr.bf16.mxu0 0
      %1303 = vmatpush1.bf16.msra.mxu0 0
      %1304 = vmatprep.subr.bf16.mxu0 0
      %1305 = vmatpush1.bf16.msra.mxu0 0
      %1306 = vmatprep.subr.bf16.mxu0 0
      %1307 = vmatpush1.bf16.msra.mxu0 0
      %1308 = vmatprep.subr.bf16.mxu0 0
      %1309 = vmatpush1.bf16.msra.mxu0 0
      %1310 = vmatprep.mubr.bf16.mxu0 0
      %1311 = vmatmul.mubr.bf16.gmra.mrb[0].mxu0 %v1276
      %v1312 = vpop.f32.mrb[0].mxu0
      %v1313 = vadd.f32 %v1272, %v1312
      %v1314 = vpop.f32.mrb[0].mxu0
      %v1315 = vpop.f32.mrb[0].mxu0
      %v1316 = vpop.f32.mrb[0].mxu0
      %1317 = vdwg.mxu0
      %v1318 = vadd.f32 %v1313, %v1169
      %v1319 = vld [vmem:[%s13] sm:$0x1]
      %v1320 = vld [vmem:[%s14] sm:$0x1]
      %v1321 = vsel %vm499, %v1318, 0.0
      %1322 = vadd.xlane.f32.xlu0 %v1321
      %v1323 = vpop.xlane.xlu0 %1322
      %v1324 = vmul.f32 %v1323, %v1145
      %v1325 = vsub.f32 %v1318, %v1324
      %v1326 = vmul.f32 %v1325, %v1325
      %v1327 = vsel %vm499, %v1326, 0.0
      %1328 = vadd.xlane.f32.xlu0 %v1327
      %v1329 = vpop.xlane.xlu0 %1328
      %v1330 = vmul.f32 %v1329, %v1145
      %v1331 = vadd.f32 %v1330, 1e-12
      %v1332 = vrsqrt.pop %v1331
      %v1333 = vmul.f32 %v1325, %v1332
      %v1335 = vlaneseq
      %v1336 = vshrl.u32 %v1335, 7
      %v1337 = vsub.s32 0, %v1336
      %v1338 = vrot.slane %v1319, %v1337
      %v1340 = vmul.f32 %v1333, %v1338
      %v1342 = vlaneseq
      %v1343 = vshrl.u32 %v1342, 7
      %v1344 = vsub.s32 0, %v1343
      %v1345 = vrot.slane %v1320, %v1344
      %v1347 = vadd.f32 %v1340, %v1345
      %1348 = vst.msk [vmem:[%s489] sm:$0xff] %vm499, %v1347
      %p1349 = scmp.lt.s32.totalorder %s26, 1
      %s1350 = scalar_select %p1349, %s26, 1
      %s1351 = smul.addr %s1350, 8
      %s1352 = scalar_lea.vmem %s15, %s1351
      // Predicated region
      $region81: #{wrap_xlnet_forward.2} parent=79 // pred_check
        %p1353 = pneg %p364
      $region82: #{wrap_xlnet_forward.2} parent=79 // pred_check_branch
        %1355 = sbr.rel (%p1353) target = $region84
      $region83: #{wrap_xlnet_forward.2} parent=79 // pred_region
        _
      $region84: #{wrap_xlnet_forward.2} parent=79 // pred_fallthru
        _
    $region80: #{wrap_xlnet_forward.2} parent=5 // pred_fallthru
      _
    %p1356 = scmp.le.s32.totalorder 2, %s21
    // Predicated region
    $region85: #{wrap_xlnet_forward.2} parent=5 // pred_check
      %p1357 = pneg %p1356
    $region86: #{wrap_xlnet_forward.2} parent=5 // pred_check_branch
      %1359 = sbr.rel (%p1357) target = $region88
    $region87: #{wrap_xlnet_forward.2} parent=5 // pred_region
      %s1360 = ssub.s32 %s21, 2
      // Predicated region
      $region89: #{wrap_xlnet_forward.2} parent=87 // pred_check
        %p1361 = pneg %p370
      $region90: #{wrap_xlnet_forward.2} parent=87 // pred_check_branch
        %1363 = sbr.rel (%p1361) target = $region92
      $region91: #{wrap_xlnet_forward.2} parent=87 // pred_region
        %p1364 = scmp.lt.s32.totalorder %s27, 1
        %s1365 = scalar_select %p1364, %s27, 1
        %s1366 = smul.addr %s1365, 8
        %s1367 = scalar_lea.vmem %s15, %s1366
      $region92: #{wrap_xlnet_forward.2} parent=87 // pred_fallthru
        _
    $region88: #{wrap_xlnet_forward.2} parent=5 // pred_fallthru
      _
  $region6: #{wrap_xlnet_forward.2} parent=0 // loop_footer
    %s25 = sadd.s32 1, %s21
  $region7: #{wrap_xlnet_forward.2} parent=0 // loop_footer_branch
    %20 = sbr.rel target = $region3
  $region8: #{wrap_xlnet_forward.2} parent=0 // loop_exit
    _

</llo_original>
